<compile_context>
chip_gen: v7x
topology: tpu7x:2x2x1
jax: 0.10.0
libtpu: 0.0.40
codegen_flags: <defaults>
</compile_context>

<pallas_src>
import functools

import numpy as np
import jax
import jax.numpy as jnp
from jax.experimental import pallas as pl
from jax.experimental.pallas import tpu as pltpu


# ---------------------------------------------------------------------------
# Fused kernel: conv1 -> pool1 -> conv2 -> pool2 -> fc1 -> fc2 -> fc3
# ---------------------------------------------------------------------------
# Activation layout inside the kernel: 2-D (rows, packed_cols) where
#   rows      = spatial_row * nb + local_batch      (row-major over h, then b)
#   packed_cols = n_channels * w + c  (w = spatial col, c = channel)
# so pooling over rows is a max of contiguous nb-row blocks, pooling over w is
# a lane-shifted max, and "keep every other w" is folded into the next layer's
# packed weights (zero rows).

def _lenet_kernel(x_ref,                    # (28*nb, 160) bf16  conv1 band LHS
                  w1_ref, b1_ref,           # (160, 168) bf16, (1, 168) f32
                  w2_ref, b2_ref,           # (5, 162, 160) bf16, (1, 160) f32
                  w3_ref, b3_ref,           # (5, 144, 120) bf16, (1, 120) f32
                  w4_ref, b4_ref,           # (120, 84) bf16, (1, 84) f32
                  w5_ref, b5_ref,           # (84, 10) bf16, (1, 10) f32
                  o_ref):                   # (nb, 10) f32
    f32 = jnp.float32
    bf16 = jnp.bfloat16
    nb = o_ref.shape[0]

    # ---- conv1: one wide-K matmul (bands prebuilt in the wrapper) ----------
    a1 = jnp.dot(x_ref[...], w1_ref[...], preferred_element_type=f32)
    a1 = jnp.maximum(a1 + b1_ref[...], 0.0)                  # (28*nb, 168)

    # ---- maxpool1 (2x2, stride 2) -------------------------------------------
    # Rows: pairwise max of contiguous nb-row blocks (h even vs h odd).
    ev1 = jnp.concatenate([a1[(2 * i) * nb:(2 * i + 1) * nb]
                           for i in range(14)], axis=0)
    od1 = jnp.concatenate([a1[(2 * i + 1) * nb:(2 * i + 2) * nb]
                           for i in range(14)], axis=0)
    pr1 = jnp.maximum(ev1, od1)                               # (14*nb, 168)
    # Columns: adjacent-w max (lane shift of 6 == one w step); the "keep even
    # w" selection is folded into the conv2 packed weights.
    p1 = jnp.maximum(pr1[:, 0:162], pr1[:, 6:168]).astype(bf16)   # (14*nb, 162)

    # ---- conv2: 5 row-band matmuls accumulated in f32 -----------------------
    acc2 = jnp.dot(p1[0:10 * nb], w2_ref[0], preferred_element_type=f32)
    for dy in range(1, 5):
        acc2 = acc2 + jnp.dot(p1[dy * nb:(dy + 10) * nb], w2_ref[dy],
                              preferred_element_type=f32)
    a2 = jnp.maximum(acc2 + b2_ref[...], 0.0)                 # (10*nb, 160)

    # ---- maxpool2 (2x2, stride 2) -------------------------------------------
    ev2 = jnp.concatenate([a2[(2 * i) * nb:(2 * i + 1) * nb]
                           for i in range(5)], axis=0)
    od2 = jnp.concatenate([a2[(2 * i + 1) * nb:(2 * i + 2) * nb]
                           for i in range(5)], axis=0)
    pr2 = jnp.maximum(ev2, od2)                               # (5*nb, 160)
    p2 = jnp.maximum(pr2[:, 0:144], pr2[:, 16:160]).astype(bf16)  # (5*nb, 144)

    # ---- flatten (torch CHW order folded into packed weights) + fc1 ---------
    acc3 = jnp.dot(p2[0:nb], w3_ref[0], preferred_element_type=f32)
    for h in range(1, 5):
        acc3 = acc3 + jnp.dot(p2[h * nb:(h + 1) * nb], w3_ref[h],
                              preferred_element_type=f32)
    h1 = jnp.maximum(acc3 + b3_ref[...], 0.0)                 # (nb, 120)

    # ---- fc2 (+ReLU), fc3 ----------------------------------------------------
    h2 = jnp.maximum(jnp.dot(h1.astype(bf16), w4_ref[...],
                             preferred_element_type=f32) + b4_ref[...], 0.0)
    out = jnp.dot(h2.astype(bf16), w5_ref[...],
                  preferred_element_type=f32) + b5_ref[...]   # (nb, 10)
    o_ref[...] = out.astype(o_ref.dtype)


# ---------------------------------------------------------------------------
# Wrapper
# ---------------------------------------------------------------------------

def _const_index_map(ndim):
    def imap(i):
        return (0,) * ndim
    return imap


def _round_up(x, m):
    return (x + m - 1) // m * m


@functools.partial(jax.jit, static_argnames=("batch_block",))
def lenet_forward(x_nchw, kp, batch_block=128):
    """x_nchw: (N, 1, 28, 28) float32, PyTorch layout. Returns (N, 10) f32."""
    n0 = x_nchw.shape[0]
    nb = batch_block if n0 >= batch_block else max(8, _round_up(n0, 8))
    n = _round_up(n0, nb)
    g = n // nb

    # Pad spatial (conv1 pad=2), pad batch to a multiple of nb, cast to bf16.
    x = x_nchw[:, 0, :, :].astype(jnp.bfloat16)               # (n0, 28, 28)
    x = jnp.pad(x, ((0, n - n0), (2, 2), (2, 2)))             # (n, 32, 32)
    # conv1 "wide-K" row bands: col = 32*dy + w_in, then arrange each batch
    # block as (h-major, local-batch) rows so the kernel's conv1 is ONE matmul.
    xb = jnp.concatenate([x[:, dy:dy + 28, :] for dy in range(5)], axis=-1)
    xb = xb.reshape(g, nb, 28, 160).transpose(0, 2, 1, 3)
    xb = xb.reshape(g, 28 * nb, 160)                          # (g, 28*nb, 160)

    weights = (kp['w1'], kp['b1'], kp['w2'], kp['b2'], kp['w3'], kp['b3'],
               kp['w4'], kp['b4'], kp['w5'], kp['b5'])
    in_specs = [pl.BlockSpec((None, 28 * nb, 160), lambda i: (i, 0, 0))]
    in_specs += [pl.BlockSpec(w.shape, _const_index_map(w.ndim))
                 for w in weights]

    out = pl.pallas_call(
        _lenet_kernel,
        out_shape=jax.ShapeDtypeStruct((n, 10), jnp.float32),
        grid=(g,),
        in_specs=in_specs,
        out_specs=pl.BlockSpec((nb, 10), lambda i: (i, 0)),
        compiler_params=pltpu.CompilerParams(
            dimension_semantics=("parallel",),
            vmem_limit_bytes=32 * 1024 * 1024),
    )(xb, *weights)
    return out[:n0]


# ---------------------------------------------------------------------------
# Parameters: PyTorch-layout init + one-time host-side repack
# ---------------------------------------------------------------------------

def init_params(key):
    """Deterministic PyTorch-layout LeNet params (kaiming-normal, zero bias)."""
    def kaiming(k, shape, fan_in):
        return jnp.sqrt(2.0 / fan_in) * jax.random.normal(k, shape, jnp.float32)
    ks = jax.random.split(key, 5)
    return {
        'conv1_w': kaiming(ks[0], (6, 1, 5, 5), 25),
        'conv1_b': jnp.zeros((6,), jnp.float32),
        'conv2_w': kaiming(ks[1], (16, 6, 5, 5), 150),
        'conv2_b': jnp.zeros((16,), jnp.float32),
        'fc1_w': kaiming(ks[2], (120, 400), 400),
        'fc1_b': jnp.zeros((120,), jnp.float32),
        'fc2_w': kaiming(ks[3], (84, 120), 120),
        'fc2_b': jnp.zeros((84,), jnp.float32),
        'fc3_w': kaiming(ks[4], (10, 84), 84),
        'fc3_b': jnp.zeros((10,), jnp.float32),
    }


def pack_params(p):
    """Repack PyTorch-layout weights into the kernel's banded/fused matrices."""
    w1 = np.asarray(p['conv1_w'], np.float32)     # (6, 1, 5, 5) OIHW
    b1 = np.asarray(p['conv1_b'], np.float32)
    w2 = np.asarray(p['conv2_w'], np.float32)     # (16, 6, 5, 5)
    b2 = np.asarray(p['conv2_b'], np.float32)
    f1w = np.asarray(p['fc1_w'], np.float32)      # (120, 400); 400 = (c, h, w)
    f1b = np.asarray(p['fc1_b'], np.float32)
    f2w = np.asarray(p['fc2_w'], np.float32)      # (84, 120)
    f2b = np.asarray(p['fc2_b'], np.float32)
    f3w = np.asarray(p['fc3_w'], np.float32)      # (10, 84)
    f3b = np.asarray(p['fc3_b'], np.float32)

    # conv1 merged banded matrix: row 32*dy + w_in, col 6*w_out + c
    wg = np.arange(28)
    w1m = np.zeros((5, 32, 168), np.float32)
    for dy in range(5):
        for dx in range(5):
            for c in range(6):
                w1m[dy, wg + dx, 6 * wg + c] = w1[c, 0, dy, dx]
    w1m = w1m.reshape(160, 168)
    b1v = np.tile(b1, 28).reshape(1, 168)

    # conv2 per-band matrices with pool1's even-column selection folded in:
    # w2m[dy, 12*(wo+dx)+ci, 16*wo+co] = w2[co, ci, dy, dx]; other rows stay 0.
    wo = np.arange(10)
    w2m = np.zeros((5, 162, 160), np.float32)
    for dy in range(5):
        for dx in range(5):
            for ci in range(6):
                for co in range(16):
                    w2m[dy, 12 * (wo + dx) + ci, 16 * wo + co] = w2[co, ci, dy, dx]
    b2v = np.tile(b2, 10).reshape(1, 160)

    # fc1 per-row matrices with pool2's even-column selection and the
    # NHWC->torch-CHW flatten folded in:
    # w3m[h, 32*w + c, out] = fc1w[out, c*25 + h*5 + w].
    w3m = np.zeros((5, 144, 120), np.float32)
    for h in range(5):
        for w in range(5):
            for c in range(16):
                w3m[h, 32 * w + c, :] = f1w[:, c * 25 + h * 5 + w]

    bf16, f32 = jnp.bfloat16, jnp.float32
    return {
        'w1': jnp.asarray(w1m, bf16),
        'b1': jnp.asarray(b1v, f32),
        'w2': jnp.asarray(w2m, bf16),
        'b2': jnp.asarray(b2v, f32),
        'w3': jnp.asarray(w3m, bf16),
        'b3': jnp.asarray(f1b.reshape(1, 120), f32),
        'w4': jnp.asarray(f2w.T.copy(), bf16),
        'b4': jnp.asarray(f2b.reshape(1, 84), f32),
        'w5': jnp.asarray(f3w.T.copy(), bf16),
        'b5': jnp.asarray(f3b.reshape(1, 10), f32),
    }


if __name__ == "__main__":
    key = jax.random.PRNGKey(0)
    kx, kparam = jax.random.split(key)
    # LeNet expects 1x28x28 inputs (fc1 is sized for 16*5*5 after two pools).
    x = jax.random.normal(kx, (2, 1, 28, 28), jnp.float32)
    params = init_params(kparam)
    packed = pack_params(params)

    out = lenet_forward(x, packed)
    out = jax.block_until_ready(out)

    assert out.shape == (2, 10), out.shape
    assert out.dtype == jnp.float32, out.dtype
    assert bool(jnp.all(jnp.isfinite(out)))
    print("KERNEL_OK")
</pallas_src>

<mosaic_0001>
module attributes {stable_mosaic.version = 11 : i64} {
  func.func @_lenet_kernel(%arg0: i32, %arg1: memref<1x224x160xbf16, #tpu.memory_space<vmem>>, %arg2: memref<160x168xbf16, #tpu.memory_space<vmem>>, %arg3: memref<1x168xf32, #tpu.memory_space<vmem>>, %arg4: memref<5x162x160xbf16, #tpu.memory_space<vmem>>, %arg5: memref<1x160xf32, #tpu.memory_space<vmem>>, %arg6: memref<5x144x120xbf16, #tpu.memory_space<vmem>>, %arg7: memref<1x120xf32, #tpu.memory_space<vmem>>, %arg8: memref<120x84xbf16, #tpu.memory_space<vmem>>, %arg9: memref<1x84xf32, #tpu.memory_space<vmem>>, %arg10: memref<84x10xbf16, #tpu.memory_space<vmem>>, %arg11: memref<1x10xf32, #tpu.memory_space<vmem>>, %arg12: memref<8x10xf32, #tpu.memory_space<vmem>>) attributes {dimension_semantics = [#tpu.dimension_semantics<parallel>], iteration_bounds = array<i64: 1>, scalar_prefetch = 0 : i64, scratch_operands = 0 : i64, tpu.core_type = #tpu.core_type<tc>, window_params = [{transform_indices = @transform_0, window_bounds = array<i64: 1, 224, 160>}, {pipeline_mode = #tpu.pipeline_mode<synchronous>, transform_indices = @transform_1, window_bounds = array<i64: 160, 168>}, {pipeline_mode = #tpu.pipeline_mode<synchronous>, transform_indices = @transform_2, window_bounds = array<i64: 1, 168>}, {pipeline_mode = #tpu.pipeline_mode<synchronous>, transform_indices = @transform_3, window_bounds = array<i64: 5, 162, 160>}, {pipeline_mode = #tpu.pipeline_mode<synchronous>, transform_indices = @transform_4, window_bounds = array<i64: 1, 160>}, {pipeline_mode = #tpu.pipeline_mode<synchronous>, transform_indices = @transform_5, window_bounds = array<i64: 5, 144, 120>}, {pipeline_mode = #tpu.pipeline_mode<synchronous>, transform_indices = @transform_6, window_bounds = array<i64: 1, 120>}, {pipeline_mode = #tpu.pipeline_mode<synchronous>, transform_indices = @transform_7, window_bounds = array<i64: 120, 84>}, {pipeline_mode = #tpu.pipeline_mode<synchronous>, transform_indices = @transform_8, window_bounds = array<i64: 1, 84>}, {pipeline_mode = #tpu.pipeline_mode<synchronous>, transform_indices = @transform_9, window_bounds = array<i64: 84, 10>}, {pipeline_mode = #tpu.pipeline_mode<synchronous>, transform_indices = @transform_10, window_bounds = array<i64: 1, 10>}, {transform_indices = @transform_11, window_bounds = array<i64: 8, 10>}]} {
    %c0 = arith.constant 0 : index
    %c0_0 = arith.constant 0 : index
    %c0_1 = arith.constant 0 : index
    %0 = vector.load %arg1[%c0, %c0_0, %c0_1] : memref<1x224x160xbf16, #tpu.memory_space<vmem>>, vector<1x224x160xbf16>
    %1 = vector.shape_cast %0 : vector<1x224x160xbf16> to vector<224x160xbf16>
    %c0_2 = arith.constant 0 : index
    %c0_3 = arith.constant 0 : index
    %2 = vector.load %arg2[%c0_2, %c0_3] : memref<160x168xbf16, #tpu.memory_space<vmem>>, vector<160x168xbf16>
    %cst = arith.constant dense<0.000000e+00> : vector<224x168xf32>
    %3 = tpu.matmul %1, %2, %cst {dimension_numbers = #tpu.dot_dimension_numbers<[1], [0], [0], [1], [0, 0, 1, 1], [], []>} : vector<224x160xbf16>, vector<160x168xbf16>, vector<224x168xf32> -> vector<224x168xf32>
    %c0_4 = arith.constant 0 : index
    %c0_5 = arith.constant 0 : index
    %4 = vector.load %arg3[%c0_4, %c0_5] : memref<1x168xf32, #tpu.memory_space<vmem>>, vector<1x168xf32>
    %5 = vector.broadcast %4 : vector<1x168xf32> to vector<224x168xf32>
    %6 = arith.addf %3, %5 : vector<224x168xf32>
    %cst_6 = arith.constant 0.000000e+00 : f32
    %7 = vector.broadcast %cst_6 : f32 to vector<224x168xf32>
    %8 = arith.maximumf %6, %7 : vector<224x168xf32>
    %9 = vector.extract_strided_slice %8 {offsets = [0, 0], sizes = [8, 168], strides = [1, 1]} : vector<224x168xf32> to vector<8x168xf32>
    %10 = vector.extract_strided_slice %8 {offsets = [16, 0], sizes = [8, 168], strides = [1, 1]} : vector<224x168xf32> to vector<8x168xf32>
    %11 = vector.extract_strided_slice %8 {offsets = [32, 0], sizes = [8, 168], strides = [1, 1]} : vector<224x168xf32> to vector<8x168xf32>
    %12 = vector.extract_strided_slice %8 {offsets = [48, 0], sizes = [8, 168], strides = [1, 1]} : vector<224x168xf32> to vector<8x168xf32>
    %13 = vector.extract_strided_slice %8 {offsets = [64, 0], sizes = [8, 168], strides = [1, 1]} : vector<224x168xf32> to vector<8x168xf32>
    %14 = vector.extract_strided_slice %8 {offsets = [80, 0], sizes = [8, 168], strides = [1, 1]} : vector<224x168xf32> to vector<8x168xf32>
    %15 = vector.extract_strided_slice %8 {offsets = [96, 0], sizes = [8, 168], strides = [1, 1]} : vector<224x168xf32> to vector<8x168xf32>
    %16 = vector.extract_strided_slice %8 {offsets = [112, 0], sizes = [8, 168], strides = [1, 1]} : vector<224x168xf32> to vector<8x168xf32>
    %17 = vector.extract_strided_slice %8 {offsets = [128, 0], sizes = [8, 168], strides = [1, 1]} : vector<224x168xf32> to vector<8x168xf32>
    %18 = vector.extract_strided_slice %8 {offsets = [144, 0], sizes = [8, 168], strides = [1, 1]} : vector<224x168xf32> to vector<8x168xf32>
    %19 = vector.extract_strided_slice %8 {offsets = [160, 0], sizes = [8, 168], strides = [1, 1]} : vector<224x168xf32> to vector<8x168xf32>
    %20 = vector.extract_strided_slice %8 {offsets = [176, 0], sizes = [8, 168], strides = [1, 1]} : vector<224x168xf32> to vector<8x168xf32>
    %21 = vector.extract_strided_slice %8 {offsets = [192, 0], sizes = [8, 168], strides = [1, 1]} : vector<224x168xf32> to vector<8x168xf32>
    %22 = vector.extract_strided_slice %8 {offsets = [208, 0], sizes = [8, 168], strides = [1, 1]} : vector<224x168xf32> to vector<8x168xf32>
    %23 = tpu.concatenate %9, %10, %11, %12, %13, %14, %15, %16, %17, %18, %19, %20, %21, %22 in 0 : vector<8x168xf32>, vector<8x168xf32>, vector<8x168xf32>, vector<8x168xf32>, vector<8x168xf32>, vector<8x168xf32>, vector<8x168xf32>, vector<8x168xf32>, vector<8x168xf32>, vector<8x168xf32>, vector<8x168xf32>, vector<8x168xf32>, vector<8x168xf32>, vector<8x168xf32> -> vector<112x168xf32>
    %24 = vector.extract_strided_slice %8 {offsets = [8, 0], sizes = [8, 168], strides = [1, 1]} : vector<224x168xf32> to vector<8x168xf32>
    %25 = vector.extract_strided_slice %8 {offsets = [24, 0], sizes = [8, 168], strides = [1, 1]} : vector<224x168xf32> to vector<8x168xf32>
    %26 = vector.extract_strided_slice %8 {offsets = [40, 0], sizes = [8, 168], strides = [1, 1]} : vector<224x168xf32> to vector<8x168xf32>
    %27 = vector.extract_strided_slice %8 {offsets = [56, 0], sizes = [8, 168], strides = [1, 1]} : vector<224x168xf32> to vector<8x168xf32>
    %28 = vector.extract_strided_slice %8 {offsets = [72, 0], sizes = [8, 168], strides = [1, 1]} : vector<224x168xf32> to vector<8x168xf32>
    %29 = vector.extract_strided_slice %8 {offsets = [88, 0], sizes = [8, 168], strides = [1, 1]} : vector<224x168xf32> to vector<8x168xf32>
    %30 = vector.extract_strided_slice %8 {offsets = [104, 0], sizes = [8, 168], strides = [1, 1]} : vector<224x168xf32> to vector<8x168xf32>
    %31 = vector.extract_strided_slice %8 {offsets = [120, 0], sizes = [8, 168], strides = [1, 1]} : vector<224x168xf32> to vector<8x168xf32>
    %32 = vector.extract_strided_slice %8 {offsets = [136, 0], sizes = [8, 168], strides = [1, 1]} : vector<224x168xf32> to vector<8x168xf32>
    %33 = vector.extract_strided_slice %8 {offsets = [152, 0], sizes = [8, 168], strides = [1, 1]} : vector<224x168xf32> to vector<8x168xf32>
    %34 = vector.extract_strided_slice %8 {offsets = [168, 0], sizes = [8, 168], strides = [1, 1]} : vector<224x168xf32> to vector<8x168xf32>
    %35 = vector.extract_strided_slice %8 {offsets = [184, 0], sizes = [8, 168], strides = [1, 1]} : vector<224x168xf32> to vector<8x168xf32>
    %36 = vector.extract_strided_slice %8 {offsets = [200, 0], sizes = [8, 168], strides = [1, 1]} : vector<224x168xf32> to vector<8x168xf32>
    %37 = vector.extract_strided_slice %8 {offsets = [216, 0], sizes = [8, 168], strides = [1, 1]} : vector<224x168xf32> to vector<8x168xf32>
    %38 = tpu.concatenate %24, %25, %26, %27, %28, %29, %30, %31, %32, %33, %34, %35, %36, %37 in 0 : vector<8x168xf32>, vector<8x168xf32>, vector<8x168xf32>, vector<8x168xf32>, vector<8x168xf32>, vector<8x168xf32>, vector<8x168xf32>, vector<8x168xf32>, vector<8x168xf32>, vector<8x168xf32>, vector<8x168xf32>, vector<8x168xf32>, vector<8x168xf32>, vector<8x168xf32> -> vector<112x168xf32>
    %39 = arith.maximumf %23, %38 : vector<112x168xf32>
    %40 = vector.extract_strided_slice %39 {offsets = [0, 0], sizes = [112, 162], strides = [1, 1]} : vector<112x168xf32> to vector<112x162xf32>
    %41 = vector.extract_strided_slice %39 {offsets = [0, 6], sizes = [112, 162], strides = [1, 1]} : vector<112x168xf32> to vector<112x162xf32>
    %42 = arith.maximumf %40, %41 : vector<112x162xf32>
    %43 = arith.truncf %42 : vector<112x162xf32> to vector<112x162xbf16>
    %44 = vector.extract_strided_slice %43 {offsets = [0, 0], sizes = [80, 162], strides = [1, 1]} : vector<112x162xbf16> to vector<80x162xbf16>
    %c0_7 = arith.constant 0 : index
    %c0_8 = arith.constant 0 : index
    %c0_9 = arith.constant 0 : index
    %45 = vector.load %arg4[%c0_7, %c0_8, %c0_9] : memref<5x162x160xbf16, #tpu.memory_space<vmem>>, vector<1x162x160xbf16>
    %46 = vector.shape_cast %45 : vector<1x162x160xbf16> to vector<162x160xbf16>
    %cst_10 = arith.constant dense<0.000000e+00> : vector<80x160xf32>
    %47 = tpu.matmul %44, %46, %cst_10 {dimension_numbers = #tpu.dot_dimension_numbers<[1], [0], [0], [1], [0, 0, 1, 1], [], []>} : vector<80x162xbf16>, vector<162x160xbf16>, vector<80x160xf32> -> vector<80x160xf32>
    %48 = vector.extract_strided_slice %43 {offsets = [8, 0], sizes = [80, 162], strides = [1, 1]} : vector<112x162xbf16> to vector<80x162xbf16>
    %c1 = arith.constant 1 : index
    %c0_11 = arith.constant 0 : index
    %c0_12 = arith.constant 0 : index
    %49 = vector.load %arg4[%c1, %c0_11, %c0_12] : memref<5x162x160xbf16, #tpu.memory_space<vmem>>, vector<1x162x160xbf16>
    %50 = vector.shape_cast %49 : vector<1x162x160xbf16> to vector<162x160xbf16>
    %cst_13 = arith.constant dense<0.000000e+00> : vector<80x160xf32>
    %51 = tpu.matmul %48, %50, %cst_13 {dimension_numbers = #tpu.dot_dimension_numbers<[1], [0], [0], [1], [0, 0, 1, 1], [], []>} : vector<80x162xbf16>, vector<162x160xbf16>, vector<80x160xf32> -> vector<80x160xf32>
    %52 = arith.addf %47, %51 : vector<80x160xf32>
    %53 = vector.extract_strided_slice %43 {offsets = [16, 0], sizes = [80, 162], strides = [1, 1]} : vector<112x162xbf16> to vector<80x162xbf16>
    %c2 = arith.constant 2 : index
    %c0_14 = arith.constant 0 : index
    %c0_15 = arith.constant 0 : index
    %54 = vector.load %arg4[%c2, %c0_14, %c0_15] : memref<5x162x160xbf16, #tpu.memory_space<vmem>>, vector<1x162x160xbf16>
    %55 = vector.shape_cast %54 : vector<1x162x160xbf16> to vector<162x160xbf16>
    %cst_16 = arith.constant dense<0.000000e+00> : vector<80x160xf32>
    %56 = tpu.matmul %53, %55, %cst_16 {dimension_numbers = #tpu.dot_dimension_numbers<[1], [0], [0], [1], [0, 0, 1, 1], [], []>} : vector<80x162xbf16>, vector<162x160xbf16>, vector<80x160xf32> -> vector<80x160xf32>
    %57 = arith.addf %52, %56 : vector<80x160xf32>
    %58 = vector.extract_strided_slice %43 {offsets = [24, 0], sizes = [80, 162], strides = [1, 1]} : vector<112x162xbf16> to vector<80x162xbf16>
    %c3 = arith.constant 3 : index
    %c0_17 = arith.constant 0 : index
    %c0_18 = arith.constant 0 : index
    %59 = vector.load %arg4[%c3, %c0_17, %c0_18] : memref<5x162x160xbf16, #tpu.memory_space<vmem>>, vector<1x162x160xbf16>
    %60 = vector.shape_cast %59 : vector<1x162x160xbf16> to vector<162x160xbf16>
    %cst_19 = arith.constant dense<0.000000e+00> : vector<80x160xf32>
    %61 = tpu.matmul %58, %60, %cst_19 {dimension_numbers = #tpu.dot_dimension_numbers<[1], [0], [0], [1], [0, 0, 1, 1], [], []>} : vector<80x162xbf16>, vector<162x160xbf16>, vector<80x160xf32> -> vector<80x160xf32>
    %62 = arith.addf %57, %61 : vector<80x160xf32>
    %63 = vector.extract_strided_slice %43 {offsets = [32, 0], sizes = [80, 162], strides = [1, 1]} : vector<112x162xbf16> to vector<80x162xbf16>
    %c4 = arith.constant 4 : index
    %c0_20 = arith.constant 0 : index
    %c0_21 = arith.constant 0 : index
    %64 = vector.load %arg4[%c4, %c0_20, %c0_21] : memref<5x162x160xbf16, #tpu.memory_space<vmem>>, vector<1x162x160xbf16>
    %65 = vector.shape_cast %64 : vector<1x162x160xbf16> to vector<162x160xbf16>
    %cst_22 = arith.constant dense<0.000000e+00> : vector<80x160xf32>
    %66 = tpu.matmul %63, %65, %cst_22 {dimension_numbers = #tpu.dot_dimension_numbers<[1], [0], [0], [1], [0, 0, 1, 1], [], []>} : vector<80x162xbf16>, vector<162x160xbf16>, vector<80x160xf32> -> vector<80x160xf32>
    %67 = arith.addf %62, %66 : vector<80x160xf32>
    %c0_23 = arith.constant 0 : index
    %c0_24 = arith.constant 0 : index
    %68 = vector.load %arg5[%c0_23, %c0_24] : memref<1x160xf32, #tpu.memory_space<vmem>>, vector<1x160xf32>
    %69 = vector.broadcast %68 : vector<1x160xf32> to vector<80x160xf32>
    %70 = arith.addf %67, %69 : vector<80x160xf32>
    %cst_25 = arith.constant 0.000000e+00 : f32
    %71 = vector.broadcast %cst_25 : f32 to vector<80x160xf32>
    %72 = arith.maximumf %70, %71 : vector<80x160xf32>
    %73 = vector.extract_strided_slice %72 {offsets = [0, 0], sizes = [8, 160], strides = [1, 1]} : vector<80x160xf32> to vector<8x160xf32>
    %74 = vector.extract_strided_slice %72 {offsets = [16, 0], sizes = [8, 160], strides = [1, 1]} : vector<80x160xf32> to vector<8x160xf32>
    %75 = vector.extract_strided_slice %72 {offsets = [32, 0], sizes = [8, 160], strides = [1, 1]} : vector<80x160xf32> to vector<8x160xf32>
    %76 = vector.extract_strided_slice %72 {offsets = [48, 0], sizes = [8, 160], strides = [1, 1]} : vector<80x160xf32> to vector<8x160xf32>
    %77 = vector.extract_strided_slice %72 {offsets = [64, 0], sizes = [8, 160], strides = [1, 1]} : vector<80x160xf32> to vector<8x160xf32>
    %78 = tpu.concatenate %73, %74, %75, %76, %77 in 0 : vector<8x160xf32>, vector<8x160xf32>, vector<8x160xf32>, vector<8x160xf32>, vector<8x160xf32> -> vector<40x160xf32>
    %79 = vector.extract_strided_slice %72 {offsets = [8, 0], sizes = [8, 160], strides = [1, 1]} : vector<80x160xf32> to vector<8x160xf32>
    %80 = vector.extract_strided_slice %72 {offsets = [24, 0], sizes = [8, 160], strides = [1, 1]} : vector<80x160xf32> to vector<8x160xf32>
    %81 = vector.extract_strided_slice %72 {offsets = [40, 0], sizes = [8, 160], strides = [1, 1]} : vector<80x160xf32> to vector<8x160xf32>
    %82 = vector.extract_strided_slice %72 {offsets = [56, 0], sizes = [8, 160], strides = [1, 1]} : vector<80x160xf32> to vector<8x160xf32>
    %83 = vector.extract_strided_slice %72 {offsets = [72, 0], sizes = [8, 160], strides = [1, 1]} : vector<80x160xf32> to vector<8x160xf32>
    %84 = tpu.concatenate %79, %80, %81, %82, %83 in 0 : vector<8x160xf32>, vector<8x160xf32>, vector<8x160xf32>, vector<8x160xf32>, vector<8x160xf32> -> vector<40x160xf32>
    %85 = arith.maximumf %78, %84 : vector<40x160xf32>
    %86 = vector.extract_strided_slice %85 {offsets = [0, 0], sizes = [40, 144], strides = [1, 1]} : vector<40x160xf32> to vector<40x144xf32>
    %87 = vector.extract_strided_slice %85 {offsets = [0, 16], sizes = [40, 144], strides = [1, 1]} : vector<40x160xf32> to vector<40x144xf32>
    %88 = arith.maximumf %86, %87 : vector<40x144xf32>
    %89 = arith.truncf %88 : vector<40x144xf32> to vector<40x144xbf16>
    %90 = vector.extract_strided_slice %89 {offsets = [0, 0], sizes = [8, 144], strides = [1, 1]} : vector<40x144xbf16> to vector<8x144xbf16>
    %c0_26 = arith.constant 0 : index
    %c0_27 = arith.constant 0 : index
    %c0_28 = arith.constant 0 : index
    %91 = vector.load %arg6[%c0_26, %c0_27, %c0_28] : memref<5x144x120xbf16, #tpu.memory_space<vmem>>, vector<1x144x120xbf16>
    %92 = vector.shape_cast %91 : vector<1x144x120xbf16> to vector<144x120xbf16>
    %cst_29 = arith.constant dense<0.000000e+00> : vector<8x120xf32>
    %93 = tpu.matmul %90, %92, %cst_29 {dimension_numbers = #tpu.dot_dimension_numbers<[1], [0], [0], [1], [0, 0, 1, 1], [], []>} : vector<8x144xbf16>, vector<144x120xbf16>, vector<8x120xf32> -> vector<8x120xf32>
    %94 = vector.extract_strided_slice %89 {offsets = [8, 0], sizes = [8, 144], strides = [1, 1]} : vector<40x144xbf16> to vector<8x144xbf16>
    %c1_30 = arith.constant 1 : index
    %c0_31 = arith.constant 0 : index
    %c0_32 = arith.constant 0 : index
    %95 = vector.load %arg6[%c1_30, %c0_31, %c0_32] : memref<5x144x120xbf16, #tpu.memory_space<vmem>>, vector<1x144x120xbf16>
    %96 = vector.shape_cast %95 : vector<1x144x120xbf16> to vector<144x120xbf16>
    %cst_33 = arith.constant dense<0.000000e+00> : vector<8x120xf32>
    %97 = tpu.matmul %94, %96, %cst_33 {dimension_numbers = #tpu.dot_dimension_numbers<[1], [0], [0], [1], [0, 0, 1, 1], [], []>} : vector<8x144xbf16>, vector<144x120xbf16>, vector<8x120xf32> -> vector<8x120xf32>
    %98 = arith.addf %93, %97 : vector<8x120xf32>
    %99 = vector.extract_strided_slice %89 {offsets = [16, 0], sizes = [8, 144], strides = [1, 1]} : vector<40x144xbf16> to vector<8x144xbf16>
    %c2_34 = arith.constant 2 : index
    %c0_35 = arith.constant 0 : index
    %c0_36 = arith.constant 0 : index
    %100 = vector.load %arg6[%c2_34, %c0_35, %c0_36] : memref<5x144x120xbf16, #tpu.memory_space<vmem>>, vector<1x144x120xbf16>
    %101 = vector.shape_cast %100 : vector<1x144x120xbf16> to vector<144x120xbf16>
    %cst_37 = arith.constant dense<0.000000e+00> : vector<8x120xf32>
    %102 = tpu.matmul %99, %101, %cst_37 {dimension_numbers = #tpu.dot_dimension_numbers<[1], [0], [0], [1], [0, 0, 1, 1], [], []>} : vector<8x144xbf16>, vector<144x120xbf16>, vector<8x120xf32> -> vector<8x120xf32>
    %103 = arith.addf %98, %102 : vector<8x120xf32>
    %104 = vector.extract_strided_slice %89 {offsets = [24, 0], sizes = [8, 144], strides = [1, 1]} : vector<40x144xbf16> to vector<8x144xbf16>
    %c3_38 = arith.constant 3 : index
    %c0_39 = arith.constant 0 : index
    %c0_40 = arith.constant 0 : index
    %105 = vector.load %arg6[%c3_38, %c0_39, %c0_40] : memref<5x144x120xbf16, #tpu.memory_space<vmem>>, vector<1x144x120xbf16>
    %106 = vector.shape_cast %105 : vector<1x144x120xbf16> to vector<144x120xbf16>
    %cst_41 = arith.constant dense<0.000000e+00> : vector<8x120xf32>
    %107 = tpu.matmul %104, %106, %cst_41 {dimension_numbers = #tpu.dot_dimension_numbers<[1], [0], [0], [1], [0, 0, 1, 1], [], []>} : vector<8x144xbf16>, vector<144x120xbf16>, vector<8x120xf32> -> vector<8x120xf32>
    %108 = arith.addf %103, %107 : vector<8x120xf32>
    %109 = vector.extract_strided_slice %89 {offsets = [32, 0], sizes = [8, 144], strides = [1, 1]} : vector<40x144xbf16> to vector<8x144xbf16>
    %c4_42 = arith.constant 4 : index
    %c0_43 = arith.constant 0 : index
    %c0_44 = arith.constant 0 : index
    %110 = vector.load %arg6[%c4_42, %c0_43, %c0_44] : memref<5x144x120xbf16, #tpu.memory_space<vmem>>, vector<1x144x120xbf16>
    %111 = vector.shape_cast %110 : vector<1x144x120xbf16> to vector<144x120xbf16>
    %cst_45 = arith.constant dense<0.000000e+00> : vector<8x120xf32>
    %112 = tpu.matmul %109, %111, %cst_45 {dimension_numbers = #tpu.dot_dimension_numbers<[1], [0], [0], [1], [0, 0, 1, 1], [], []>} : vector<8x144xbf16>, vector<144x120xbf16>, vector<8x120xf32> -> vector<8x120xf32>
    %113 = arith.addf %108, %112 : vector<8x120xf32>
    %c0_46 = arith.constant 0 : index
    %c0_47 = arith.constant 0 : index
    %114 = vector.load %arg7[%c0_46, %c0_47] : memref<1x120xf32, #tpu.memory_space<vmem>>, vector<1x120xf32>
    %115 = vector.broadcast %114 : vector<1x120xf32> to vector<8x120xf32>
    %116 = arith.addf %113, %115 : vector<8x120xf32>
    %cst_48 = arith.constant 0.000000e+00 : f32
    %117 = vector.broadcast %cst_48 : f32 to vector<8x120xf32>
    %118 = arith.maximumf %116, %117 : vector<8x120xf32>
    %119 = arith.truncf %118 : vector<8x120xf32> to vector<8x120xbf16>
    %c0_49 = arith.constant 0 : index
    %c0_50 = arith.constant 0 : index
    %120 = vector.load %arg8[%c0_49, %c0_50] : memref<120x84xbf16, #tpu.memory_space<vmem>>, vector<120x84xbf16>
    %cst_51 = arith.constant dense<0.000000e+00> : vector<8x84xf32>
    %121 = tpu.matmul %119, %120, %cst_51 {dimension_numbers = #tpu.dot_dimension_numbers<[1], [0], [0], [1], [0, 0, 1, 1], [], []>} : vector<8x120xbf16>, vector<120x84xbf16>, vector<8x84xf32> -> vector<8x84xf32>
    %c0_52 = arith.constant 0 : index
    %c0_53 = arith.constant 0 : index
    %122 = vector.load %arg9[%c0_52, %c0_53] : memref<1x84xf32, #tpu.memory_space<vmem>>, vector<1x84xf32>
    %123 = vector.broadcast %122 : vector<1x84xf32> to vector<8x84xf32>
    %124 = arith.addf %121, %123 : vector<8x84xf32>
    %cst_54 = arith.constant 0.000000e+00 : f32
    %125 = vector.broadcast %cst_54 : f32 to vector<8x84xf32>
    %126 = arith.maximumf %124, %125 : vector<8x84xf32>
    %127 = arith.truncf %126 : vector<8x84xf32> to vector<8x84xbf16>
    %c0_55 = arith.constant 0 : index
    %c0_56 = arith.constant 0 : index
    %128 = vector.load %arg10[%c0_55, %c0_56] : memref<84x10xbf16, #tpu.memory_space<vmem>>, vector<84x10xbf16>
    %cst_57 = arith.constant dense<0.000000e+00> : vector<8x10xf32>
    %129 = tpu.matmul %127, %128, %cst_57 {dimension_numbers = #tpu.dot_dimension_numbers<[1], [0], [0], [1], [0, 0, 1, 1], [], []>} : vector<8x84xbf16>, vector<84x10xbf16>, vector<8x10xf32> -> vector<8x10xf32>
    %c0_58 = arith.constant 0 : index
    %c0_59 = arith.constant 0 : index
    %130 = vector.load %arg11[%c0_58, %c0_59] : memref<1x10xf32, #tpu.memory_space<vmem>>, vector<1x10xf32>
    %131 = vector.broadcast %130 : vector<1x10xf32> to vector<8x10xf32>
    %132 = arith.addf %129, %131 : vector<8x10xf32>
    %c0_60 = arith.constant 0 : index
    %c0_61 = arith.constant 0 : index
    %133 = vector.load %arg12[%c0_60, %c0_61] : memref<8x10xf32, #tpu.memory_space<vmem>>, vector<8x10xf32>
    tpu.vector_store %arg12[%c0_60, %c0_61], %132 {strides = array<i32>} : memref<8x10xf32, #tpu.memory_space<vmem>>, vector<8x10xf32>,
    return
  }
  func.func @transform_0(%arg0: i32) -> (i32, i32, i32) {
    %c0_i32 = arith.constant 0 : i32
    %c0_i32_0 = arith.constant 0 : i32
    %c0_i32_1 = arith.constant 0 : i32
    return %arg0, %c0_i32, %c0_i32_0 : i32, i32, i32
  }
  func.func @transform_1(%arg0: i32) -> (i32, i32) {
    %c0_i32 = arith.constant 0 : i32
    %c0_i32_0 = arith.constant 0 : i32
    %c0_i32_1 = arith.constant 0 : i32
    return %c0_i32, %c0_i32_0 : i32, i32
  }
  func.func @transform_2(%arg0: i32) -> (i32, i32) {
    %c0_i32 = arith.constant 0 : i32
    %c0_i32_0 = arith.constant 0 : i32
    %c0_i32_1 = arith.constant 0 : i32
    return %c0_i32, %c0_i32_0 : i32, i32
  }
  func.func @transform_3(%arg0: i32) -> (i32, i32, i32) {
    %c0_i32 = arith.constant 0 : i32
    %c0_i32_0 = arith.constant 0 : i32
    %c0_i32_1 = arith.constant 0 : i32
    %c0_i32_2 = arith.constant 0 : i32
    return %c0_i32, %c0_i32_0, %c0_i32_1 : i32, i32, i32
  }
  func.func @transform_4(%arg0: i32) -> (i32, i32) {
    %c0_i32 = arith.constant 0 : i32
    %c0_i32_0 = arith.constant 0 : i32
    %c0_i32_1 = arith.constant 0 : i32
    return %c0_i32, %c0_i32_0 : i32, i32
  }
  func.func @transform_5(%arg0: i32) -> (i32, i32, i32) {
    %c0_i32 = arith.constant 0 : i32
    %c0_i32_0 = arith.constant 0 : i32
    %c0_i32_1 = arith.constant 0 : i32
    %c0_i32_2 = arith.constant 0 : i32
    return %c0_i32, %c0_i32_0, %c0_i32_1 : i32, i32, i32
  }
  func.func @transform_6(%arg0: i32) -> (i32, i32) {
    %c0_i32 = arith.constant 0 : i32
    %c0_i32_0 = arith.constant 0 : i32
    %c0_i32_1 = arith.constant 0 : i32
    return %c0_i32, %c0_i32_0 : i32, i32
  }
  func.func @transform_7(%arg0: i32) -> (i32, i32) {
    %c0_i32 = arith.constant 0 : i32
    %c0_i32_0 = arith.constant 0 : i32
    %c0_i32_1 = arith.constant 0 : i32
    return %c0_i32, %c0_i32_0 : i32, i32
  }
  func.func @transform_8(%arg0: i32) -> (i32, i32) {
    %c0_i32 = arith.constant 0 : i32
    %c0_i32_0 = arith.constant 0 : i32
    %c0_i32_1 = arith.constant 0 : i32
    return %c0_i32, %c0_i32_0 : i32, i32
  }
  func.func @transform_9(%arg0: i32) -> (i32, i32) {
    %c0_i32 = arith.constant 0 : i32
    %c0_i32_0 = arith.constant 0 : i32
    %c0_i32_1 = arith.constant 0 : i32
    return %c0_i32, %c0_i32_0 : i32, i32
  }
  func.func @transform_10(%arg0: i32) -> (i32, i32) {
    %c0_i32 = arith.constant 0 : i32
    %c0_i32_0 = arith.constant 0 : i32
    %c0_i32_1 = arith.constant 0 : i32
    return %c0_i32, %c0_i32_0 : i32, i32
  }
  func.func @transform_11(%arg0: i32) -> (i32, i32) {
    %c0_i32 = arith.constant 0 : i32
    %c0_i32_0 = arith.constant 0 : i32
    return %arg0, %c0_i32 : i32, i32
  }
}

</mosaic_0001>

<llo_original>
// kernel: lenet_forward.1
$region0: #{lenet_forward.1}
  #allocation0 [shape = 'u32[]', space=smem, size = 0x4, offset = 0x4, fixed_abs, tag = 'smem constant byte address 0x4 - core index']
  #allocation1 [shape = 'u32[144,128]{1,0:T(1,128)}', space=vmem, size = 0x12000, scoped, tag = 'internal scratch']
  %s0 = inlined_call_operand.vmem [shape: bf16[1,224,160], index: 0, kind: input, shape index: {}]
  %s1 = inlined_call_operand.vmem [shape: bf16[160,168], index: 1, kind: input, shape index: {}]
  %s2 = inlined_call_operand.vmem [shape: f32[1,168], index: 2, kind: input, shape index: {}]
  %s3 = inlined_call_operand.vmem [shape: bf16[5,162,160], index: 3, kind: input, shape index: {}]
  %s4 = inlined_call_operand.vmem [shape: f32[1,160], index: 4, kind: input, shape index: {}]
  %s5 = inlined_call_operand.vmem [shape: bf16[5,144,120], index: 5, kind: input, shape index: {}]
  %s6 = inlined_call_operand.vmem [shape: f32[1,120], index: 6, kind: input, shape index: {}]
  %s7 = inlined_call_operand.vmem [shape: bf16[120,84], index: 7, kind: input, shape index: {}]
  %s8 = inlined_call_operand.vmem [shape: f32[1,84], index: 8, kind: input, shape index: {}]
  %s9 = inlined_call_operand.vmem [shape: bf16[84,10], index: 9, kind: input, shape index: {}]
  %s10 = inlined_call_operand.vmem [shape: f32[1,10], index: 10, kind: input, shape index: {}]
  %s11 = inlined_call_operand.vmem [shape: f32[8,10], index: 11, kind: output, shape index: {}]
  %s12 = sld [smem:[#allocation0]]
  $region54: #{lenet_forward.1} parent=0
    _
  %s14 = ssub.s32 1, %s12
  %s15 = scalar_select 0, %s14, %s12
  // Predicated region
  $region2: #{lenet_forward.1} parent=0 // pred_check
    _
  $region3: #{lenet_forward.1} parent=0 // pred_check_branch
    %17 = sbr.rel (0) target = $region5
  $region4: #{lenet_forward.1} parent=0 // pred_region
    _
  $region5: #{lenet_forward.1} parent=0 // pred_fallthru
    _
  // Predicated region
  $region6: #{lenet_forward.1} parent=0 // pred_check
    _
  $region7: #{lenet_forward.1} parent=0 // pred_check_branch
    %19 = sbr.rel (0) target = $region9
  $region8: #{lenet_forward.1} parent=0 // pred_region
    _
  $region9: #{lenet_forward.1} parent=0 // pred_fallthru
    _
  // Predicated region
  $region10: #{lenet_forward.1} parent=0 // pred_check
    _
  $region11: #{lenet_forward.1} parent=0 // pred_check_branch
    %21 = sbr.rel (0) target = $region13
  $region12: #{lenet_forward.1} parent=0 // pred_region
    _
  $region13: #{lenet_forward.1} parent=0 // pred_fallthru
    _
  // Predicated region
  $region14: #{lenet_forward.1} parent=0 // pred_check
    _
  $region15: #{lenet_forward.1} parent=0 // pred_check_branch
    %23 = sbr.rel (0) target = $region17
  $region16: #{lenet_forward.1} parent=0 // pred_region
    _
  $region17: #{lenet_forward.1} parent=0 // pred_fallthru
    _
  // Predicated region
  $region18: #{lenet_forward.1} parent=0 // pred_check
    _
  $region19: #{lenet_forward.1} parent=0 // pred_check_branch
    %25 = sbr.rel (0) target = $region21
  $region20: #{lenet_forward.1} parent=0 // pred_region
    _
  $region21: #{lenet_forward.1} parent=0 // pred_fallthru
    _
  // Predicated region
  $region22: #{lenet_forward.1} parent=0 // pred_check
    _
  $region23: #{lenet_forward.1} parent=0 // pred_check_branch
    %27 = sbr.rel (0) target = $region25
  $region24: #{lenet_forward.1} parent=0 // pred_region
    _
  $region25: #{lenet_forward.1} parent=0 // pred_fallthru
    _
  // Predicated region
  $region26: #{lenet_forward.1} parent=0 // pred_check
    _
  $region27: #{lenet_forward.1} parent=0 // pred_check_branch
    %29 = sbr.rel (0) target = $region29
  $region28: #{lenet_forward.1} parent=0 // pred_region
    _
  $region29: #{lenet_forward.1} parent=0 // pred_fallthru
    _
  // Predicated region
  $region30: #{lenet_forward.1} parent=0 // pred_check
    _
  $region31: #{lenet_forward.1} parent=0 // pred_check_branch
    %31 = sbr.rel (0) target = $region33
  $region32: #{lenet_forward.1} parent=0 // pred_region
    _
  $region33: #{lenet_forward.1} parent=0 // pred_fallthru
    _
  // Predicated region
  $region34: #{lenet_forward.1} parent=0 // pred_check
    _
  $region35: #{lenet_forward.1} parent=0 // pred_check_branch
    %33 = sbr.rel (0) target = $region37
  $region36: #{lenet_forward.1} parent=0 // pred_region
    _
  $region37: #{lenet_forward.1} parent=0 // pred_fallthru
    _
  // Predicated region
  $region38: #{lenet_forward.1} parent=0 // pred_check
    _
  $region39: #{lenet_forward.1} parent=0 // pred_check_branch
    %35 = sbr.rel (0) target = $region41
  $region40: #{lenet_forward.1} parent=0 // pred_region
    _
  $region41: #{lenet_forward.1} parent=0 // pred_fallthru
    _
  // Predicated region
  $region42: #{lenet_forward.1} parent=0 // pred_check
    _
  $region43: #{lenet_forward.1} parent=0 // pred_check_branch
    %37 = sbr.rel (0) target = $region45
  $region44: #{lenet_forward.1} parent=0 // pred_region
    _
  $region45: #{lenet_forward.1} parent=0 // pred_fallthru
    _
  %v39 = vld [vmem:[%s0] sm:$0xff]
  %v40 = vld [vmem:[%s0 + $0x8] sm:$0xff]
  %v41 = vld [vmem:[%s0 + $0x10] sm:$0xff]
  %v42 = vld [vmem:[%s0 + $0x18] sm:$0xff]
  %v43 = vld [vmem:[%s0 + $0x20] sm:$0xff]
  %v44 = vld [vmem:[%s0 + $0x28] sm:$0xff]
  %v45 = vld [vmem:[%s0 + $0x30] sm:$0xff]
  %v46 = vld [vmem:[%s0 + $0x38] sm:$0xff]
  %v47 = vld [vmem:[%s0 + $0x40] sm:$0xff]
  %v48 = vld [vmem:[%s0 + $0x48] sm:$0xff]
  %v49 = vld [vmem:[%s0 + $0x50] sm:$0xff]
  %v50 = vld [vmem:[%s0 + $0x58] sm:$0xff]
  %v51 = vld [vmem:[%s0 + $0x60] sm:$0xff]
  %v52 = vld [vmem:[%s0 + $0x68] sm:$0xff]
  %v53 = vld [vmem:[%s0 + $0x70] sm:$0xff]
  %v54 = vld [vmem:[%s0 + $0x78] sm:$0xff]
  %v55 = vld [vmem:[%s0 + $0x80] sm:$0xff]
  %v56 = vld [vmem:[%s0 + $0x88] sm:$0xff]
  %v57 = vld [vmem:[%s0 + $0x90] sm:$0xff]
  %v58 = vld [vmem:[%s0 + $0x98] sm:$0xff]
  %v59 = vld [vmem:[%s0 + $0xa0] sm:$0xff]
  %v60 = vld [vmem:[%s0 + $0xa8] sm:$0xff]
  %v61 = vld [vmem:[%s0 + $0xb0] sm:$0xff]
  %v62 = vld [vmem:[%s0 + $0xb8] sm:$0xff]
  %v63 = vld [vmem:[%s0 + $0xc0] sm:$0xff]
  %v64 = vld [vmem:[%s0 + $0xc8] sm:$0xff]
  %v65 = vld [vmem:[%s0 + $0xd0] sm:$0xff]
  %v66 = vld [vmem:[%s0 + $0xd8] sm:$0xff]
  %v67 = vld [vmem:[%s1] sm:$0xff]
  %v68 = vld [vmem:[%s1 + $0x8] sm:$0xff]
  %v69 = vld [vmem:[%s1 + $0x10] sm:$0xff]
  %v70 = vld [vmem:[%s1 + $0x18] sm:$0xff]
  %v71 = vld [vmem:[%s1 + $0x20] sm:$0xff]
  %v72 = vld [vmem:[%s1 + $0x28] sm:$0xff]
  %v73 = vld [vmem:[%s1 + $0x30] sm:$0xff]
  %v74 = vld [vmem:[%s1 + $0x38] sm:$0xff]
  %v75 = vld [vmem:[%s1 + $0x40] sm:$0xff]
  %v76 = vld [vmem:[%s1 + $0x48] sm:$0xff]
  %v77 = vld [vmem:[%s1 + $0x50] sm:$0xff]
  %v78 = vld [vmem:[%s1 + $0x58] sm:$0xff]
  %v79 = vld [vmem:[%s1 + $0x60] sm:$0xff]
  %v80 = vld [vmem:[%s1 + $0x68] sm:$0xff]
  %v81 = vld [vmem:[%s1 + $0x70] sm:$0xff]
  %v82 = vld [vmem:[%s1 + $0x78] sm:$0xff]
  %v83 = vld [vmem:[%s1 + $0x80] sm:$0xff]
  %v84 = vld [vmem:[%s1 + $0x88] sm:$0xff]
  %v85 = vld [vmem:[%s1 + $0x90] sm:$0xff]
  %v86 = vld [vmem:[%s1 + $0x98] sm:$0xff]
  %v87 = vld [vmem:[%s2] sm:$0x3]
  %v89 = vlaneseq
  %v90 = vshrl.u32 %v89, 7
  %v91 = vsub.s32 0, %v90
  %v92 = vrot.slane %v87, %v91
  %v93 = vlaneseq
  %v94 = vshrl.u32 %v93, 7
  %v95 = vsub.s32 1, %v94
  %v96 = vrot.slane %v87, %v95
  %v127 = vunpack.c.l.b16 %v39
  %v128 = vunpack.c.h.b16 %v39
  %v129 = vunpack.c.l.b16 %v40
  %v130 = vunpack.c.h.b16 %v40
  %v131 = vunpack.c.l.b16 %v41
  %v132 = vunpack.c.h.b16 %v41
  %v133 = vunpack.c.l.b16 %v42
  %v134 = vunpack.c.h.b16 %v42
  %v135 = vunpack.c.l.b16 %v43
  %v136 = vunpack.c.h.b16 %v43
  %v137 = vunpack.c.l.b16 %v44
  %v138 = vunpack.c.h.b16 %v44
  %v139 = vunpack.c.l.b16 %v45
  %v140 = vunpack.c.h.b16 %v45
  %v141 = vunpack.c.l.b16 %v46
  %v142 = vunpack.c.h.b16 %v46
  %v143 = vunpack.c.l.b16 %v47
  %v144 = vunpack.c.h.b16 %v47
  %v145 = vunpack.c.l.b16 %v48
  %v146 = vunpack.c.h.b16 %v48
  %v147 = vunpack.c.l.b16 %v49
  %v148 = vunpack.c.h.b16 %v49
  %v149 = vunpack.c.l.b16 %v50
  %v150 = vunpack.c.h.b16 %v50
  %v151 = vunpack.c.l.b16 %v51
  %v152 = vunpack.c.h.b16 %v51
  %v153 = vunpack.c.l.b16 %v52
  %v154 = vunpack.c.h.b16 %v52
  %v155 = vunpack.c.l.b16 %v53
  %v156 = vunpack.c.h.b16 %v53
  %v157 = vunpack.c.l.b16 %v54
  %v158 = vunpack.c.h.b16 %v54
  %v159 = vunpack.c.l.b16 %v55
  %v160 = vunpack.c.h.b16 %v55
  %v161 = vunpack.c.l.b16 %v56
  %v162 = vunpack.c.h.b16 %v56
  %v163 = vunpack.c.l.b16 %v57
  %v164 = vunpack.c.h.b16 %v57
  %v165 = vunpack.c.l.b16 %v58
  %v166 = vunpack.c.h.b16 %v58
  %v167 = vunpack.c.l.b16 %v59
  %v168 = vunpack.c.h.b16 %v59
  %v169 = vunpack.c.l.b16 %v60
  %v170 = vunpack.c.h.b16 %v60
  %v171 = vunpack.c.l.b16 %v61
  %v172 = vunpack.c.h.b16 %v61
  %v173 = vunpack.c.l.b16 %v62
  %v174 = vunpack.c.h.b16 %v62
  %v175 = vunpack.c.l.b16 %v63
  %v176 = vunpack.c.h.b16 %v63
  %v177 = vunpack.c.l.b16 %v64
  %v178 = vunpack.c.h.b16 %v64
  %v179 = vunpack.c.l.b16 %v65
  %v180 = vunpack.c.h.b16 %v65
  %v181 = vunpack.c.l.b16 %v66
  %v182 = vunpack.c.h.b16 %v66
  %v183 = vpack.c.b16 %v129, %v127
  %v184 = vpack.c.b16 %v130, %v128
  %v185 = vpack.c.b16 %v133, %v131
  %v186 = vpack.c.b16 %v134, %v132
  %v187 = vpack.c.b16 %v137, %v135
  %v188 = vpack.c.b16 %v138, %v136
  %v189 = vpack.c.b16 %v141, %v139
  %v190 = vpack.c.b16 %v142, %v140
  %v191 = vpack.c.b16 %v145, %v143
  %v192 = vpack.c.b16 %v146, %v144
  %v193 = vpack.c.b16 %v149, %v147
  %v194 = vpack.c.b16 %v150, %v148
  %v195 = vpack.c.b16 %v153, %v151
  %v196 = vpack.c.b16 %v154, %v152
  %v197 = vpack.c.b16 %v157, %v155
  %v198 = vpack.c.b16 %v158, %v156
  %v199 = vpack.c.b16 %v161, %v159
  %v200 = vpack.c.b16 %v162, %v160
  %v201 = vpack.c.b16 %v165, %v163
  %v202 = vpack.c.b16 %v166, %v164
  %v203 = vpack.c.b16 %v169, %v167
  %v204 = vpack.c.b16 %v170, %v168
  %v205 = vpack.c.b16 %v173, %v171
  %v206 = vpack.c.b16 %v174, %v172
  %v207 = vpack.c.b16 %v177, %v175
  %v208 = vpack.c.b16 %v178, %v176
  %v209 = vpack.c.b16 %v181, %v179
  %v210 = vpack.c.b16 %v182, %v180
  %v245 = vunpack.c.l.b16 %v67
  %v246 = vunpack.c.h.b16 %v67
  %v247 = vunpack.c.l.b16 %v68
  %v248 = vunpack.c.h.b16 %v68
  %v249 = vunpack.c.l.b16 %v69
  %v250 = vunpack.c.h.b16 %v69
  %v251 = vunpack.c.l.b16 %v70
  %v252 = vunpack.c.h.b16 %v70
  %v253 = vunpack.c.l.b16 %v71
  %v254 = vunpack.c.h.b16 %v71
  %v255 = vunpack.c.l.b16 %v72
  %v256 = vunpack.c.h.b16 %v72
  %v257 = vunpack.c.l.b16 %v73
  %v258 = vunpack.c.h.b16 %v73
  %v259 = vunpack.c.l.b16 %v74
  %v260 = vunpack.c.h.b16 %v74
  %v261 = vunpack.c.l.b16 %v75
  %v262 = vunpack.c.h.b16 %v75
  %v263 = vunpack.c.l.b16 %v76
  %v264 = vunpack.c.h.b16 %v76
  %v265 = vunpack.c.l.b16 %v77
  %v266 = vunpack.c.h.b16 %v77
  %v267 = vunpack.c.l.b16 %v78
  %v268 = vunpack.c.h.b16 %v78
  %v269 = vunpack.c.l.b16 %v79
  %v270 = vunpack.c.h.b16 %v79
  %v271 = vunpack.c.l.b16 %v80
  %v272 = vunpack.c.h.b16 %v80
  %v273 = vunpack.c.l.b16 %v81
  %v274 = vunpack.c.h.b16 %v81
  %v275 = vunpack.c.l.b16 %v82
  %v276 = vunpack.c.h.b16 %v82
  %v277 = vunpack.c.l.b16 %v83
  %v278 = vunpack.c.h.b16 %v83
  %v279 = vunpack.c.l.b16 %v84
  %v280 = vunpack.c.h.b16 %v84
  %v281 = vunpack.c.l.b16 %v85
  %v282 = vunpack.c.h.b16 %v85
  %v283 = vunpack.c.l.b16 %v86
  %v284 = vunpack.c.h.b16 %v86
  %v285 = vpack.c.b16 %v247, %v245
  %v286 = vpack.c.b16 %v248, %v246
  %v287 = vpack.c.b16 %v251, %v249
  %v288 = vpack.c.b16 %v252, %v250
  %v289 = vpack.c.b16 %v255, %v253
  %v290 = vpack.c.b16 %v256, %v254
  %v291 = vpack.c.b16 %v259, %v257
  %v292 = vpack.c.b16 %v260, %v258
  %v293 = vpack.c.b16 %v263, %v261
  %v294 = vpack.c.b16 %v264, %v262
  %v295 = vpack.c.b16 %v267, %v265
  %v296 = vpack.c.b16 %v268, %v266
  %v297 = vpack.c.b16 %v271, %v269
  %v298 = vpack.c.b16 %v272, %v270
  %v299 = vpack.c.b16 %v275, %v273
  %v300 = vpack.c.b16 %v276, %v274
  %v301 = vpack.c.b16 %v279, %v277
  %v302 = vpack.c.b16 %v280, %v278
  %v303 = vpack.c.b16 %v283, %v281
  %v304 = vpack.c.b16 %v284, %v282
  %vm325 = vcmask 261120
  %v327 = vsel %vm325, %v184, 0
  %v330 = vsel %vm325, %v186, 0
  %v333 = vsel %vm325, %v188, 0
  %v336 = vsel %vm325, %v190, 0
  %v339 = vsel %vm325, %v192, 0
  %v342 = vsel %vm325, %v194, 0
  %v345 = vsel %vm325, %v196, 0
  %v348 = vsel %vm325, %v198, 0
  %v351 = vsel %vm325, %v200, 0
  %v354 = vsel %vm325, %v202, 0
  %v357 = vsel %vm325, %v204, 0
  %v360 = vsel %vm325, %v206, 0
  %v363 = vsel %vm325, %v208, 0
  %v366 = vsel %vm325, %v210, 0
  %368 = vmatprep.subr.bf16.mxu0 %v286
  %369 = vmatpush1.bf16.msra.mxu0 %v285
  %370 = vmatprep.subr.bf16.mxu0 %v288
  %371 = vmatpush1.bf16.msra.mxu0 %v287
  %372 = vmatprep.subr.bf16.mxu0 %v290
  %373 = vmatpush1.bf16.msra.mxu0 %v289
  %374 = vmatprep.subr.bf16.mxu0 %v292
  %375 = vmatpush1.bf16.msra.mxu0 %v291
  %376 = vmatprep.subr.bf16.mxu0 %v294
  %377 = vmatpush1.bf16.msra.mxu0 %v293
  %378 = vmatprep.subr.bf16.mxu0 %v296
  %379 = vmatpush1.bf16.msra.mxu0 %v295
  %380 = vmatprep.subr.bf16.mxu0 %v298
  %381 = vmatpush1.bf16.msra.mxu0 %v297
  %382 = vmatprep.subr.bf16.mxu0 %v300
  %383 = vmatpush1.bf16.msra.mxu0 %v299
  %384 = vmatprep.subr.bf16.mxu0 %v302
  %385 = vmatpush1.bf16.msra.mxu0 %v301
  %386 = vmatprep.subr.bf16.mxu0 %v304
  %387 = vmatpush1.bf16.msra.mxu0 %v303
  %388 = vmatprep.subr.bf16.mxu0 0
  %389 = vmatpush1.bf16.msra.mxu0 0
  %390 = vmatprep.subr.bf16.mxu0 0
  %391 = vmatpush1.bf16.msra.mxu0 0
  %392 = vmatprep.subr.bf16.mxu0 0
  %393 = vmatpush1.bf16.msra.mxu0 0
  %394 = vmatprep.subr.bf16.mxu0 0
  %395 = vmatpush1.bf16.msra.mxu0 0
  %396 = vmatprep.subr.bf16.mxu0 0
  %397 = vmatpush1.bf16.msra.mxu0 0
  %398 = vmatprep.subr.bf16.mxu0 0
  %399 = vmatpush1.bf16.msra.mxu0 0
  %400 = vmatprep.mubr.bf16.mxu0 %v327
  %401 = vmatmul.mubr.bf16.gmra.mrb[0].mxu0 %v183
  %v402 = vpop.f32.mrb[0].mxu0
  %v403 = vadd.f32 %v92, %v402
  %v404 = vpop.f32.mrb[0].mxu0
  %v405 = vadd.f32 %v96, %v404
  %v406 = vpop.f32.mrb[0].mxu0
  %v407 = vadd.f32 %v92, %v406
  %v408 = vpop.f32.mrb[0].mxu0
  %v409 = vadd.f32 %v96, %v408
  %410 = vmatprep.mubr.bf16.mxu0 %v330
  %411 = vmatmul.mubr.bf16.gmra.mrb[0].mxu0 %v185
  %v412 = vpop.f32.mrb[0].mxu0
  %v413 = vadd.f32 %v92, %v412
  %v414 = vpop.f32.mrb[0].mxu0
  %v415 = vadd.f32 %v96, %v414
  %v416 = vpop.f32.mrb[0].mxu0
  %v417 = vadd.f32 %v92, %v416
  %v418 = vpop.f32.mrb[0].mxu0
  %v419 = vadd.f32 %v96, %v418
  %420 = vmatprep.mubr.bf16.mxu0 %v333
  %421 = vmatmul.mubr.bf16.gmra.mrb[0].mxu0 %v187
  %v422 = vpop.f32.mrb[0].mxu0
  %v423 = vadd.f32 %v92, %v422
  %v424 = vpop.f32.mrb[0].mxu0
  %v425 = vadd.f32 %v96, %v424
  %v426 = vpop.f32.mrb[0].mxu0
  %v427 = vadd.f32 %v92, %v426
  %v428 = vpop.f32.mrb[0].mxu0
  %v429 = vadd.f32 %v96, %v428
  %430 = vmatprep.mubr.bf16.mxu0 %v336
  %431 = vmatmul.mubr.bf16.gmra.mrb[0].mxu0 %v189
  %v432 = vpop.f32.mrb[0].mxu0
  %v433 = vadd.f32 %v92, %v432
  %v434 = vpop.f32.mrb[0].mxu0
  %v435 = vadd.f32 %v96, %v434
  %v436 = vpop.f32.mrb[0].mxu0
  %v437 = vadd.f32 %v92, %v436
  %v438 = vpop.f32.mrb[0].mxu0
  %v439 = vadd.f32 %v96, %v438
  %440 = vmatprep.mubr.bf16.mxu0 %v339
  %441 = vmatmul.mubr.bf16.gmra.mrb[0].mxu0 %v191
  %v442 = vpop.f32.mrb[0].mxu0
  %v443 = vadd.f32 %v92, %v442
  %v444 = vpop.f32.mrb[0].mxu0
  %v445 = vadd.f32 %v96, %v444
  %v446 = vpop.f32.mrb[0].mxu0
  %v447 = vadd.f32 %v92, %v446
  %v448 = vpop.f32.mrb[0].mxu0
  %v449 = vadd.f32 %v96, %v448
  %450 = vmatprep.mubr.bf16.mxu0 %v342
  %451 = vmatmul.mubr.bf16.gmra.mrb[0].mxu0 %v193
  %v452 = vpop.f32.mrb[0].mxu0
  %v453 = vadd.f32 %v92, %v452
  %v454 = vpop.f32.mrb[0].mxu0
  %v455 = vadd.f32 %v96, %v454
  %v456 = vpop.f32.mrb[0].mxu0
  %v457 = vadd.f32 %v92, %v456
  %v458 = vpop.f32.mrb[0].mxu0
  %v459 = vadd.f32 %v96, %v458
  %460 = vmatprep.mubr.bf16.mxu0 %v345
  %461 = vmatmul.mubr.bf16.gmra.mrb[0].mxu0 %v195
  %v462 = vpop.f32.mrb[0].mxu0
  %v463 = vadd.f32 %v92, %v462
  %v464 = vpop.f32.mrb[0].mxu0
  %v465 = vadd.f32 %v96, %v464
  %v466 = vpop.f32.mrb[0].mxu0
  %v467 = vadd.f32 %v92, %v466
  %v468 = vpop.f32.mrb[0].mxu0
  %v469 = vadd.f32 %v96, %v468
  %470 = vmatprep.mubr.bf16.mxu0 %v348
  %471 = vmatmul.mubr.bf16.gmra.mrb[0].mxu0 %v197
  %v472 = vpop.f32.mrb[0].mxu0
  %v473 = vadd.f32 %v92, %v472
  %v474 = vpop.f32.mrb[0].mxu0
  %v475 = vadd.f32 %v96, %v474
  %v476 = vpop.f32.mrb[0].mxu0
  %v477 = vadd.f32 %v92, %v476
  %v478 = vpop.f32.mrb[0].mxu0
  %v479 = vadd.f32 %v96, %v478
  %480 = vmatprep.mubr.bf16.mxu0 %v351
  %481 = vmatmul.mubr.bf16.gmra.mrb[0].mxu0 %v199
  %v482 = vpop.f32.mrb[0].mxu0
  %v483 = vadd.f32 %v92, %v482
  %v484 = vpop.f32.mrb[0].mxu0
  %v485 = vadd.f32 %v96, %v484
  %v486 = vpop.f32.mrb[0].mxu0
  %v487 = vadd.f32 %v92, %v486
  %v488 = vpop.f32.mrb[0].mxu0
  %v489 = vadd.f32 %v96, %v488
  %490 = vmatprep.mubr.bf16.mxu0 %v354
  %491 = vmatmul.mubr.bf16.gmra.mrb[0].mxu0 %v201
  %v492 = vpop.f32.mrb[0].mxu0
  %v493 = vadd.f32 %v92, %v492
  %v494 = vpop.f32.mrb[0].mxu0
  %v495 = vadd.f32 %v96, %v494
  %v496 = vpop.f32.mrb[0].mxu0
  %v497 = vadd.f32 %v92, %v496
  %v498 = vpop.f32.mrb[0].mxu0
  %v499 = vadd.f32 %v96, %v498
  %500 = vmatprep.mubr.bf16.mxu0 %v357
  %501 = vmatmul.mubr.bf16.gmra.mrb[0].mxu0 %v203
  %v502 = vpop.f32.mrb[0].mxu0
  %v503 = vadd.f32 %v92, %v502
  %v504 = vpop.f32.mrb[0].mxu0
  %v505 = vadd.f32 %v96, %v504
  %v506 = vpop.f32.mrb[0].mxu0
  %v507 = vadd.f32 %v92, %v506
  %v508 = vpop.f32.mrb[0].mxu0
  %v509 = vadd.f32 %v96, %v508
  %510 = vmatprep.mubr.bf16.mxu0 %v360
  %511 = vmatmul.mubr.bf16.gmra.mrb[0].mxu0 %v205
  %v512 = vpop.f32.mrb[0].mxu0
  %v513 = vadd.f32 %v92, %v512
  %v514 = vpop.f32.mrb[0].mxu0
  %v515 = vadd.f32 %v96, %v514
  %v516 = vpop.f32.mrb[0].mxu0
  %v517 = vadd.f32 %v92, %v516
  %v518 = vpop.f32.mrb[0].mxu0
  %v519 = vadd.f32 %v96, %v518
  %520 = vmatprep.mubr.bf16.mxu0 %v363
  %521 = vmatmul.mubr.bf16.gmra.mrb[0].mxu0 %v207
  %v522 = vpop.f32.mrb[0].mxu0
  %v523 = vadd.f32 %v92, %v522
  %v524 = vpop.f32.mrb[0].mxu0
  %v525 = vadd.f32 %v96, %v524
  %v526 = vpop.f32.mrb[0].mxu0
  %v527 = vadd.f32 %v92, %v526
  %v528 = vpop.f32.mrb[0].mxu0
  %v529 = vadd.f32 %v96, %v528
  %530 = vmatprep.mubr.bf16.mxu0 %v366
  %531 = vmatmul.mubr.bf16.gmra.mrb[0].mxu0 %v209
  %v532 = vpop.f32.mrb[0].mxu0
  %v533 = vadd.f32 %v92, %v532
  %v534 = vpop.f32.mrb[0].mxu0
  %v535 = vadd.f32 %v96, %v534
  %v536 = vpop.f32.mrb[0].mxu0
  %v537 = vadd.f32 %v92, %v536
  %v538 = vpop.f32.mrb[0].mxu0
  %v539 = vadd.f32 %v96, %v538
  %540 = vdwg.mxu0
  %v541 = vmax.f32 %v403, 0.0
  %v542 = vmax.f32 %v405, 0.0
  %v543 = vmax.f32 %v407, 0.0
  %v544 = vmax.f32 %v409, 0.0
  %v545 = vmax.f32 %v413, 0.0
  %v546 = vmax.f32 %v415, 0.0
  %v547 = vmax.f32 %v417, 0.0
  %v548 = vmax.f32 %v419, 0.0
  %v549 = vmax.f32 %v423, 0.0
  %v550 = vmax.f32 %v425, 0.0
  %v551 = vmax.f32 %v427, 0.0
  %v552 = vmax.f32 %v429, 0.0
  %v553 = vmax.f32 %v433, 0.0
  %v554 = vmax.f32 %v435, 0.0
  %v555 = vmax.f32 %v437, 0.0
  %v556 = vmax.f32 %v439, 0.0
  %v557 = vmax.f32 %v443, 0.0
  %v558 = vmax.f32 %v445, 0.0
  %v559 = vmax.f32 %v447, 0.0
  %v560 = vmax.f32 %v449, 0.0
  %v561 = vmax.f32 %v453, 0.0
  %v562 = vmax.f32 %v455, 0.0
  %v563 = vmax.f32 %v457, 0.0
  %v564 = vmax.f32 %v459, 0.0
  %v565 = vmax.f32 %v463, 0.0
  %v566 = vmax.f32 %v465, 0.0
  %v567 = vmax.f32 %v467, 0.0
  %v568 = vmax.f32 %v469, 0.0
  %v569 = vmax.f32 %v473, 0.0
  %v570 = vmax.f32 %v475, 0.0
  %v571 = vmax.f32 %v477, 0.0
  %v572 = vmax.f32 %v479, 0.0
  %v573 = vmax.f32 %v483, 0.0
  %v574 = vmax.f32 %v485, 0.0
  %v575 = vmax.f32 %v487, 0.0
  %v576 = vmax.f32 %v489, 0.0
  %v577 = vmax.f32 %v493, 0.0
  %v578 = vmax.f32 %v495, 0.0
  %v579 = vmax.f32 %v497, 0.0
  %v580 = vmax.f32 %v499, 0.0
  %v581 = vmax.f32 %v503, 0.0
  %v582 = vmax.f32 %v505, 0.0
  %v583 = vmax.f32 %v507, 0.0
  %v584 = vmax.f32 %v509, 0.0
  %v585 = vmax.f32 %v513, 0.0
  %v586 = vmax.f32 %v515, 0.0
  %v587 = vmax.f32 %v517, 0.0
  %v588 = vmax.f32 %v519, 0.0
  %v589 = vmax.f32 %v523, 0.0
  %v590 = vmax.f32 %v525, 0.0
  %v591 = vmax.f32 %v527, 0.0
  %v592 = vmax.f32 %v529, 0.0
  %v593 = vmax.f32 %v533, 0.0
  %v594 = vmax.f32 %v535, 0.0
  %v595 = vmax.f32 %v537, 0.0
  %v596 = vmax.f32 %v539, 0.0
  %v597 = vmax.f32 %v541, %v543
  %v598 = vmax.f32 %v542, %v544
  %v599 = vmax.f32 %v545, %v547
  %v600 = vmax.f32 %v546, %v548
  %v601 = vmax.f32 %v549, %v551
  %v602 = vmax.f32 %v550, %v552
  %v603 = vmax.f32 %v553, %v555
  %v604 = vmax.f32 %v554, %v556
  %v605 = vmax.f32 %v557, %v559
  %v606 = vmax.f32 %v558, %v560
  %v607 = vmax.f32 %v561, %v563
  %v608 = vmax.f32 %v562, %v564
  %v609 = vmax.f32 %v565, %v567
  %v610 = vmax.f32 %v566, %v568
  %v611 = vmax.f32 %v569, %v571
  %v612 = vmax.f32 %v570, %v572
  %v613 = vmax.f32 %v573, %v575
  %v614 = vmax.f32 %v574, %v576
  %v615 = vmax.f32 %v577, %v579
  %v616 = vmax.f32 %v578, %v580
  %v617 = vmax.f32 %v581, %v583
  %v618 = vmax.f32 %v582, %v584
  %v619 = vmax.f32 %v585, %v587
  %v620 = vmax.f32 %v586, %v588
  %v621 = vmax.f32 %v589, %v591
  %v622 = vmax.f32 %v590, %v592
  %v623 = vmax.f32 %v593, %v595
  %v624 = vmax.f32 %v594, %v596
  %653 = vrot.lane.b32.xlu0 %v597, 122
  %v654 = vpop.permute.xlu0 %653
  %655 = vrot.lane.b32.xlu0 %v598, 122
  %v656 = vpop.permute.xlu0 %655
  %657 = vrot.lane.b32.xlu0 %v599, 122
  %v658 = vpop.permute.xlu0 %657
  %659 = vrot.lane.b32.xlu0 %v600, 122
  %v660 = vpop.permute.xlu0 %659
  %661 = vrot.lane.b32.xlu0 %v601, 122
  %v662 = vpop.permute.xlu0 %661
  %663 = vrot.lane.b32.xlu0 %v602, 122
  %v664 = vpop.permute.xlu0 %663
  %665 = vrot.lane.b32.xlu0 %v603, 122
  %v666 = vpop.permute.xlu0 %665
  %667 = vrot.lane.b32.xlu0 %v604, 122
  %v668 = vpop.permute.xlu0 %667
  %669 = vrot.lane.b32.xlu0 %v605, 122
  %v670 = vpop.permute.xlu0 %669
  %671 = vrot.lane.b32.xlu0 %v606, 122
  %v672 = vpop.permute.xlu0 %671
  %673 = vrot.lane.b32.xlu0 %v607, 122
  %v674 = vpop.permute.xlu0 %673
  %675 = vrot.lane.b32.xlu0 %v608, 122
  %v676 = vpop.permute.xlu0 %675
  %677 = vrot.lane.b32.xlu0 %v609, 122
  %v678 = vpop.permute.xlu0 %677
  %679 = vrot.lane.b32.xlu0 %v610, 122
  %v680 = vpop.permute.xlu0 %679
  %681 = vrot.lane.b32.xlu0 %v611, 122
  %v682 = vpop.permute.xlu0 %681
  %683 = vrot.lane.b32.xlu0 %v612, 122
  %v684 = vpop.permute.xlu0 %683
  %685 = vrot.lane.b32.xlu0 %v613, 122
  %v686 = vpop.permute.xlu0 %685
  %687 = vrot.lane.b32.xlu0 %v614, 122
  %v688 = vpop.permute.xlu0 %687
  %689 = vrot.lane.b32.xlu0 %v615, 122
  %v690 = vpop.permute.xlu0 %689
  %691 = vrot.lane.b32.xlu0 %v616, 122
  %v692 = vpop.permute.xlu0 %691
  %693 = vrot.lane.b32.xlu0 %v617, 122
  %v694 = vpop.permute.xlu0 %693
  %695 = vrot.lane.b32.xlu0 %v618, 122
  %v696 = vpop.permute.xlu0 %695
  %697 = vrot.lane.b32.xlu0 %v619, 122
  %v698 = vpop.permute.xlu0 %697
  %699 = vrot.lane.b32.xlu0 %v620, 122
  %v700 = vpop.permute.xlu0 %699
  %701 = vrot.lane.b32.xlu0 %v621, 122
  %v702 = vpop.permute.xlu0 %701
  %703 = vrot.lane.b32.xlu0 %v622, 122
  %v704 = vpop.permute.xlu0 %703
  %705 = vrot.lane.b32.xlu0 %v623, 122
  %v706 = vpop.permute.xlu0 %705
  %707 = vrot.lane.b32.xlu0 %v624, 122
  %v708 = vpop.permute.xlu0 %707
  %vm709 = vcmask 998400
  %v710 = vsel %vm709, %v654, %v656
  %v711 = vsel %vm709, %v658, %v660
  %v712 = vsel %vm709, %v662, %v664
  %v713 = vsel %vm709, %v666, %v668
  %v714 = vsel %vm709, %v670, %v672
  %v715 = vsel %vm709, %v674, %v676
  %v716 = vsel %vm709, %v678, %v680
  %v717 = vsel %vm709, %v682, %v684
  %v718 = vsel %vm709, %v686, %v688
  %v719 = vsel %vm709, %v690, %v692
  %v720 = vsel %vm709, %v694, %v696
  %v721 = vsel %vm709, %v698, %v700
  %v722 = vsel %vm709, %v702, %v704
  %v723 = vsel %vm709, %v706, %v708
  %v752 = vmax.f32 %v597, %v710
  %v753 = vmax.f32 %v598, %v656
  %v754 = vmax.f32 %v599, %v711
  %v755 = vmax.f32 %v600, %v660
  %v756 = vmax.f32 %v601, %v712
  %v757 = vmax.f32 %v602, %v664
  %v758 = vmax.f32 %v603, %v713
  %v759 = vmax.f32 %v604, %v668
  %v760 = vmax.f32 %v605, %v714
  %v761 = vmax.f32 %v606, %v672
  %v762 = vmax.f32 %v607, %v715
  %v763 = vmax.f32 %v608, %v676
  %v764 = vmax.f32 %v609, %v716
  %v765 = vmax.f32 %v610, %v680
  %v766 = vmax.f32 %v611, %v717
  %v767 = vmax.f32 %v612, %v684
  %v768 = vmax.f32 %v613, %v718
  %v769 = vmax.f32 %v614, %v688
  %v770 = vmax.f32 %v615, %v719
  %v771 = vmax.f32 %v616, %v692
  %v772 = vmax.f32 %v617, %v720
  %v773 = vmax.f32 %v618, %v696
  %v774 = vmax.f32 %v619, %v721
  %v775 = vmax.f32 %v620, %v700
  %v776 = vmax.f32 %v621, %v722
  %v777 = vmax.f32 %v622, %v704
  %v778 = vmax.f32 %v623, %v723
  %v779 = vmax.f32 %v624, %v708
  %v780 = vpack.c.bf16 %v754, %v752
  %v781 = vpack.c.bf16 %v755, %v753
  %v782 = vpack.c.bf16 %v758, %v756
  %v783 = vpack.c.bf16 %v759, %v757
  %v784 = vpack.c.bf16 %v762, %v760
  %v785 = vpack.c.bf16 %v763, %v761
  %v786 = vpack.c.bf16 %v766, %v764
  %v787 = vpack.c.bf16 %v767, %v765
  %v788 = vpack.c.bf16 %v770, %v768
  %v789 = vpack.c.bf16 %v771, %v769
  %v790 = vpack.c.bf16 %v774, %v772
  %v791 = vpack.c.bf16 %v775, %v773
  %v792 = vpack.c.bf16 %v778, %v776
  %v793 = vpack.c.bf16 %v779, %v777
  %v794 = vld [vmem:[%s3] sm:$0xff]
  %v795 = vld [vmem:[%s3 + $0x8] sm:$0xff]
  %v796 = vld [vmem:[%s3 + $0x10] sm:$0xff]
  %v797 = vld [vmem:[%s3 + $0x18] sm:$0xff]
  %v798 = vld [vmem:[%s3 + $0x20] sm:$0xff]
  %v799 = vld [vmem:[%s3 + $0x28] sm:$0xff]
  %v800 = vld [vmem:[%s3 + $0x30] sm:$0xff]
  %v801 = vld [vmem:[%s3 + $0x38] sm:$0xff]
  %v802 = vld [vmem:[%s3 + $0x40] sm:$0xff]
  %v803 = vld [vmem:[%s3 + $0x48] sm:$0xff]
  %v804 = vld [vmem:[%s3 + $0x50] sm:$0xff]
  %v805 = vld [vmem:[%s3 + $0x58] sm:$0xff]
  %v806 = vld [vmem:[%s3 + $0x60] sm:$0xff]
  %v807 = vld [vmem:[%s3 + $0x68] sm:$0xff]
  %v808 = vld [vmem:[%s3 + $0x70] sm:$0xff]
  %v809 = vld [vmem:[%s3 + $0x78] sm:$0xff]
  %v810 = vld [vmem:[%s3 + $0x80] sm:$0xff]
  %v811 = vld [vmem:[%s3 + $0x88] sm:$0xff]
  %v812 = vld [vmem:[%s3 + $0x90] sm:$0xff]
  %v813 = vld [vmem:[%s3 + $0x98] sm:$0xff]
  %v814 = vld [vmem:[%s3 + $0xa0] sm:$0x11]
  %s815 = scalar_lea.vmem %s3, 168
  %v816 = vld [vmem:[%s815] sm:$0xff]
  %v817 = vld [vmem:[%s815 + $0x8] sm:$0xff]
  %v818 = vld [vmem:[%s815 + $0x10] sm:$0xff]
  %v819 = vld [vmem:[%s815 + $0x18] sm:$0xff]
  %v820 = vld [vmem:[%s815 + $0x20] sm:$0xff]
  %v821 = vld [vmem:[%s815 + $0x28] sm:$0xff]
  %v822 = vld [vmem:[%s815 + $0x30] sm:$0xff]
  %v823 = vld [vmem:[%s815 + $0x38] sm:$0xff]
  %v824 = vld [vmem:[%s815 + $0x40] sm:$0xff]
  %v825 = vld [vmem:[%s815 + $0x48] sm:$0xff]
  %v826 = vld [vmem:[%s815 + $0x50] sm:$0xff]
  %v827 = vld [vmem:[%s815 + $0x58] sm:$0xff]
  %v828 = vld [vmem:[%s815 + $0x60] sm:$0xff]
  %v829 = vld [vmem:[%s815 + $0x68] sm:$0xff]
  %v830 = vld [vmem:[%s815 + $0x70] sm:$0xff]
  %v831 = vld [vmem:[%s815 + $0x78] sm:$0xff]
  %v832 = vld [vmem:[%s815 + $0x80] sm:$0xff]
  %v833 = vld [vmem:[%s815 + $0x88] sm:$0xff]
  %v834 = vld [vmem:[%s815 + $0x90] sm:$0xff]
  %v835 = vld [vmem:[%s815 + $0x98] sm:$0xff]
  %v836 = vld [vmem:[%s815 + $0xa0] sm:$0x11]
  %vm849 = vcmask 1043456
  %v850 = vrot.slane %v780, 4
  %v851 = vrot.slane %v782, 4
  %v852 = vsel %vm849, %v850, %v851
  %v853 = vrot.slane %v781, 4
  %v854 = vrot.slane %v783, 4
  %v855 = vsel %vm849, %v853, %v854
  %v856 = vrot.slane %v784, 4
  %v857 = vsel %vm849, %v851, %v856
  %v858 = vrot.slane %v785, 4
  %v859 = vsel %vm849, %v854, %v858
  %v860 = vrot.slane %v786, 4
  %v861 = vsel %vm849, %v856, %v860
  %v862 = vrot.slane %v787, 4
  %v863 = vsel %vm849, %v858, %v862
  %v864 = vrot.slane %v788, 4
  %v865 = vsel %vm849, %v860, %v864
  %v866 = vrot.slane %v789, 4
  %v867 = vsel %vm849, %v862, %v866
  %v868 = vrot.slane %v790, 4
  %v869 = vsel %vm849, %v864, %v868
  %v870 = vrot.slane %v791, 4
  %v871 = vsel %vm849, %v866, %v870
  %v898 = vunpack.c.l.b16 %v816
  %v899 = vunpack.c.h.b16 %v816
  %v900 = vunpack.c.l.b16 %v817
  %v901 = vunpack.c.h.b16 %v817
  %v902 = vunpack.c.l.b16 %v818
  %v903 = vunpack.c.h.b16 %v818
  %v904 = vunpack.c.l.b16 %v819
  %v905 = vunpack.c.h.b16 %v819
  %v906 = vunpack.c.l.b16 %v820
  %v907 = vunpack.c.h.b16 %v820
  %v908 = vunpack.c.l.b16 %v821
  %v909 = vunpack.c.h.b16 %v821
  %v910 = vunpack.c.l.b16 %v822
  %v911 = vunpack.c.h.b16 %v822
  %v912 = vunpack.c.l.b16 %v823
  %v913 = vunpack.c.h.b16 %v823
  %v914 = vunpack.c.l.b16 %v824
  %v915 = vunpack.c.h.b16 %v824
  %v916 = vunpack.c.l.b16 %v825
  %v917 = vunpack.c.h.b16 %v825
  %v918 = vunpack.c.l.b16 %v826
  %v919 = vunpack.c.h.b16 %v826
  %v920 = vunpack.c.l.b16 %v827
  %v921 = vunpack.c.h.b16 %v827
  %v922 = vunpack.c.l.b16 %v828
  %v923 = vunpack.c.h.b16 %v828
  %v924 = vunpack.c.l.b16 %v829
  %v925 = vunpack.c.h.b16 %v829
  %v926 = vunpack.c.l.b16 %v830
  %v927 = vunpack.c.h.b16 %v830
  %v928 = vunpack.c.l.b16 %v831
  %v929 = vunpack.c.h.b16 %v831
  %v930 = vunpack.c.l.b16 %v832
  %v931 = vunpack.c.h.b16 %v832
  %v932 = vunpack.c.l.b16 %v833
  %v933 = vunpack.c.h.b16 %v833
  %v934 = vunpack.c.l.b16 %v834
  %v935 = vunpack.c.h.b16 %v834
  %v936 = vunpack.c.l.b16 %v835
  %v937 = vunpack.c.h.b16 %v835
  %v938 = vunpack.c.l.b16 %v836
  %v939 = vunpack.c.h.b16 %v836
  %v940 = vpack.c.b16 %v900, %v898
  %v941 = vpack.c.b16 %v901, %v899
  %v942 = vpack.c.b16 %v904, %v902
  %v943 = vpack.c.b16 %v905, %v903
  %v944 = vpack.c.b16 %v908, %v906
  %v945 = vpack.c.b16 %v909, %v907
  %v946 = vpack.c.b16 %v912, %v910
  %v947 = vpack.c.b16 %v913, %v911
  %v948 = vpack.c.b16 %v916, %v914
  %v949 = vpack.c.b16 %v917, %v915
  %v950 = vpack.c.b16 %v920, %v918
  %v951 = vpack.c.b16 %v921, %v919
  %v952 = vpack.c.b16 %v924, %v922
  %v953 = vpack.c.b16 %v925, %v923
  %v954 = vpack.c.b16 %v928, %v926
  %v955 = vpack.c.b16 %v929, %v927
  %v956 = vpack.c.b16 %v932, %v930
  %v957 = vpack.c.b16 %v933, %v931
  %v958 = vpack.c.b16 %v936, %v934
  %v959 = vpack.c.b16 %v937, %v935
  %v960 = vpack.c.b16 %v938, %v938
  %v961 = vpack.c.b16 %v939, %v939
  %vm982 = vcmask 277504
  %v984 = vsel %vm982, %v855, 0
  %v987 = vsel %vm982, %v859, 0
  %v990 = vsel %vm982, %v863, 0
  %v993 = vsel %vm982, %v867, 0
  %v996 = vsel %vm982, %v871, 0
  %vm998 = vcmask 1040384
  %v1000 = vsel %vm998, %v960, 0
  %v1003 = vsel %vm998, %v961, 0
  %1005 = vmatprep.subr.bf16.mxu0 %v941
  %1006 = vmatpush1.bf16.msra.mxu0 %v940
  %1007 = vmatprep.subr.bf16.mxu0 %v943
  %1008 = vmatpush1.bf16.msra.mxu0 %v942
  %1009 = vmatprep.subr.bf16.mxu0 %v945
  %1010 = vmatpush1.bf16.msra.mxu0 %v944
  %1011 = vmatprep.subr.bf16.mxu0 %v947
  %1012 = vmatpush1.bf16.msra.mxu0 %v946
  %1013 = vmatprep.subr.bf16.mxu0 %v949
  %1014 = vmatpush1.bf16.msra.mxu0 %v948
  %1015 = vmatprep.subr.bf16.mxu0 %v951
  %1016 = vmatpush1.bf16.msra.mxu0 %v950
  %1017 = vmatprep.subr.bf16.mxu0 %v953
  %1018 = vmatpush1.bf16.msra.mxu0 %v952
  %1019 = vmatprep.subr.bf16.mxu0 %v955
  %1020 = vmatpush1.bf16.msra.mxu0 %v954
  %1021 = vmatprep.subr.bf16.mxu0 %v957
  %1022 = vmatpush1.bf16.msra.mxu0 %v956
  %1023 = vmatprep.subr.bf16.mxu0 %v959
  %1024 = vmatpush1.bf16.msra.mxu0 %v958
  %1025 = vmatprep.subr.bf16.mxu0 %v1003
  %1026 = vmatpush1.bf16.msra.mxu0 %v1000
  %1027 = vmatprep.subr.bf16.mxu0 0
  %1028 = vmatpush1.bf16.msra.mxu0 0
  %1029 = vmatprep.subr.bf16.mxu0 0
  %1030 = vmatpush1.bf16.msra.mxu0 0
  %1031 = vmatprep.subr.bf16.mxu0 0
  %1032 = vmatpush1.bf16.msra.mxu0 0
  %1033 = vmatprep.subr.bf16.mxu0 0
  %1034 = vmatpush1.bf16.msra.mxu0 0
  %1035 = vmatprep.subr.bf16.mxu0 0
  %1036 = vmatpush1.bf16.msra.mxu0 0
  %1037 = vmatprep.mubr.bf16.mxu0 %v984
  %1038 = vmatmul.mubr.bf16.gmra.mrb[0].mxu0 %v852
  %v1039 = vpop.f32.mrb[0].mxu0
  %v1040 = vadd.f32 0.0, %v1039
  %v1041 = vpop.f32.mrb[0].mxu0
  %v1042 = vadd.f32 0.0, %v1041
  %v1043 = vpop.f32.mrb[0].mxu0
  %v1044 = vadd.f32 0.0, %v1043
  %v1045 = vpop.f32.mrb[0].mxu0
  %v1046 = vadd.f32 0.0, %v1045
  %1047 = vmatprep.mubr.bf16.mxu0 %v987
  %1048 = vmatmul.mubr.bf16.gmra.mrb[0].mxu0 %v857
  %v1049 = vpop.f32.mrb[0].mxu0
  %v1050 = vadd.f32 0.0, %v1049
  %v1051 = vpop.f32.mrb[0].mxu0
  %v1052 = vadd.f32 0.0, %v1051
  %v1053 = vpop.f32.mrb[0].mxu0
  %v1054 = vadd.f32 0.0, %v1053
  %v1055 = vpop.f32.mrb[0].mxu0
  %v1056 = vadd.f32 0.0, %v1055
  %1057 = vmatprep.mubr.bf16.mxu0 %v990
  %1058 = vmatmul.mubr.bf16.gmra.mrb[0].mxu0 %v861
  %v1059 = vpop.f32.mrb[0].mxu0
  %v1060 = vadd.f32 0.0, %v1059
  %v1061 = vpop.f32.mrb[0].mxu0
  %v1062 = vadd.f32 0.0, %v1061
  %v1063 = vpop.f32.mrb[0].mxu0
  %v1064 = vadd.f32 0.0, %v1063
  %v1065 = vpop.f32.mrb[0].mxu0
  %v1066 = vadd.f32 0.0, %v1065
  %1067 = vmatprep.mubr.bf16.mxu0 %v993
  %1068 = vmatmul.mubr.bf16.gmra.mrb[0].mxu0 %v865
  %v1069 = vpop.f32.mrb[0].mxu0
  %v1070 = vadd.f32 0.0, %v1069
  %v1071 = vpop.f32.mrb[0].mxu0
  %v1072 = vadd.f32 0.0, %v1071
  %v1073 = vpop.f32.mrb[0].mxu0
  %v1074 = vadd.f32 0.0, %v1073
  %v1075 = vpop.f32.mrb[0].mxu0
  %v1076 = vadd.f32 0.0, %v1075
  %1077 = vmatprep.mubr.bf16.mxu0 %v996
  %1078 = vmatmul.mubr.bf16.gmra.mrb[0].mxu0 %v869
  %v1079 = vpop.f32.mrb[0].mxu0
  %v1080 = vadd.f32 0.0, %v1079
  %v1081 = vpop.f32.mrb[0].mxu0
  %v1082 = vadd.f32 0.0, %v1081
  %v1083 = vpop.f32.mrb[0].mxu0
  %v1084 = vadd.f32 0.0, %v1083
  %v1085 = vpop.f32.mrb[0].mxu0
  %v1086 = vadd.f32 0.0, %v1085
  %1087 = vdwg.mxu0
  %v1109 = vunpack.c.l.b16 %v794
  %v1110 = vunpack.c.h.b16 %v794
  %v1111 = vunpack.c.l.b16 %v795
  %v1112 = vunpack.c.h.b16 %v795
  %v1113 = vunpack.c.l.b16 %v796
  %v1114 = vunpack.c.h.b16 %v796
  %v1115 = vunpack.c.l.b16 %v797
  %v1116 = vunpack.c.h.b16 %v797
  %v1117 = vunpack.c.l.b16 %v798
  %v1118 = vunpack.c.h.b16 %v798
  %v1119 = vunpack.c.l.b16 %v799
  %v1120 = vunpack.c.h.b16 %v799
  %v1121 = vunpack.c.l.b16 %v800
  %v1122 = vunpack.c.h.b16 %v800
  %v1123 = vunpack.c.l.b16 %v801
  %v1124 = vunpack.c.h.b16 %v801
  %v1125 = vunpack.c.l.b16 %v802
  %v1126 = vunpack.c.h.b16 %v802
  %v1127 = vunpack.c.l.b16 %v803
  %v1128 = vunpack.c.h.b16 %v803
  %v1129 = vunpack.c.l.b16 %v804
  %v1130 = vunpack.c.h.b16 %v804
  %v1131 = vunpack.c.l.b16 %v805
  %v1132 = vunpack.c.h.b16 %v805
  %v1133 = vunpack.c.l.b16 %v806
  %v1134 = vunpack.c.h.b16 %v806
  %v1135 = vunpack.c.l.b16 %v807
  %v1136 = vunpack.c.h.b16 %v807
  %v1137 = vunpack.c.l.b16 %v808
  %v1138 = vunpack.c.h.b16 %v808
  %v1139 = vunpack.c.l.b16 %v809
  %v1140 = vunpack.c.h.b16 %v809
  %v1141 = vunpack.c.l.b16 %v810
  %v1142 = vunpack.c.h.b16 %v810
  %v1143 = vunpack.c.l.b16 %v811
  %v1144 = vunpack.c.h.b16 %v811
  %v1145 = vunpack.c.l.b16 %v812
  %v1146 = vunpack.c.h.b16 %v812
  %v1147 = vunpack.c.l.b16 %v813
  %v1148 = vunpack.c.h.b16 %v813
  %v1149 = vunpack.c.l.b16 %v814
  %v1150 = vunpack.c.h.b16 %v814
  %v1151 = vpack.c.b16 %v1111, %v1109
  %v1152 = vpack.c.b16 %v1112, %v1110
  %v1153 = vpack.c.b16 %v1115, %v1113
  %v1154 = vpack.c.b16 %v1116, %v1114
  %v1155 = vpack.c.b16 %v1119, %v1117
  %v1156 = vpack.c.b16 %v1120, %v1118
  %v1157 = vpack.c.b16 %v1123, %v1121
  %v1158 = vpack.c.b16 %v1124, %v1122
  %v1159 = vpack.c.b16 %v1127, %v1125
  %v1160 = vpack.c.b16 %v1128, %v1126
  %v1161 = vpack.c.b16 %v1131, %v1129
  %v1162 = vpack.c.b16 %v1132, %v1130
  %v1163 = vpack.c.b16 %v1135, %v1133
  %v1164 = vpack.c.b16 %v1136, %v1134
  %v1165 = vpack.c.b16 %v1139, %v1137
  %v1166 = vpack.c.b16 %v1140, %v1138
  %v1167 = vpack.c.b16 %v1143, %v1141
  %v1168 = vpack.c.b16 %v1144, %v1142
  %v1169 = vpack.c.b16 %v1147, %v1145
  %v1170 = vpack.c.b16 %v1148, %v1146
  %v1171 = vpack.c.b16 %v1149, %v1149
  %v1172 = vpack.c.b16 %v1150, %v1150
  %v1194 = vsel %vm982, %v781, 0
  %v1197 = vsel %vm982, %v783, 0
  %v1200 = vsel %vm982, %v785, 0
  %v1203 = vsel %vm982, %v787, 0
  %v1206 = vsel %vm982, %v789, 0
  %v1209 = vsel %vm998, %v1171, 0
  %v1212 = vsel %vm998, %v1172, 0
  %1214 = vmatprep.subr.bf16.mxu0 %v1152
  %1215 = vmatpush1.bf16.msra.mxu0 %v1151
  %1216 = vmatprep.subr.bf16.mxu0 %v1154
  %1217 = vmatpush1.bf16.msra.mxu0 %v1153
  %1218 = vmatprep.subr.bf16.mxu0 %v1156
  %1219 = vmatpush1.bf16.msra.mxu0 %v1155
  %1220 = vmatprep.subr.bf16.mxu0 %v1158
  %1221 = vmatpush1.bf16.msra.mxu0 %v1157
  %1222 = vmatprep.subr.bf16.mxu0 %v1160
  %1223 = vmatpush1.bf16.msra.mxu0 %v1159
  %1224 = vmatprep.subr.bf16.mxu0 %v1162
  %1225 = vmatpush1.bf16.msra.mxu0 %v1161
  %1226 = vmatprep.subr.bf16.mxu0 %v1164
  %1227 = vmatpush1.bf16.msra.mxu0 %v1163
  %1228 = vmatprep.subr.bf16.mxu0 %v1166
  %1229 = vmatpush1.bf16.msra.mxu0 %v1165
  %1230 = vmatprep.subr.bf16.mxu0 %v1168
  %1231 = vmatpush1.bf16.msra.mxu0 %v1167
  %1232 = vmatprep.subr.bf16.mxu0 %v1170
  %1233 = vmatpush1.bf16.msra.mxu0 %v1169
  %1234 = vmatprep.subr.bf16.mxu0 %v1212
  %1235 = vmatpush1.bf16.msra.mxu0 %v1209
  %1236 = vmatprep.subr.bf16.mxu0 0
  %1237 = vmatpush1.bf16.msra.mxu0 0
  %1238 = vmatprep.subr.bf16.mxu0 0
  %1239 = vmatpush1.bf16.msra.mxu0 0
  %1240 = vmatprep.subr.bf16.mxu0 0
  %1241 = vmatpush1.bf16.msra.mxu0 0
  %1242 = vmatprep.subr.bf16.mxu0 0
  %1243 = vmatpush1.bf16.msra.mxu0 0
  %1244 = vmatprep.subr.bf16.mxu0 0
  %1245 = vmatpush1.bf16.msra.mxu0 0
  %1246 = vmatprep.mubr.bf16.mxu0 %v1194
  %1247 = vmatmul.mubr.bf16.gmra.mrb[0].mxu0 %v780
  %v1248 = vpop.f32.mrb[0].mxu0
  %v1249 = vadd.f32 %v1040, %v1248
  %v1250 = vpop.f32.mrb[0].mxu0
  %v1251 = vadd.f32 %v1042, %v1250
  %v1252 = vpop.f32.mrb[0].mxu0
  %v1253 = vadd.f32 %v1044, %v1252
  %v1254 = vpop.f32.mrb[0].mxu0
  %v1255 = vadd.f32 %v1046, %v1254
  %1256 = vmatprep.mubr.bf16.mxu0 %v1197
  %1257 = vmatmul.mubr.bf16.gmra.mrb[0].mxu0 %v782
  %v1258 = vpop.f32.mrb[0].mxu0
  %v1259 = vadd.f32 %v1050, %v1258
  %v1260 = vpop.f32.mrb[0].mxu0
  %v1261 = vadd.f32 %v1052, %v1260
  %v1262 = vpop.f32.mrb[0].mxu0
  %v1263 = vadd.f32 %v1054, %v1262
  %v1264 = vpop.f32.mrb[0].mxu0
  %v1265 = vadd.f32 %v1056, %v1264
  %1266 = vmatprep.mubr.bf16.mxu0 %v1200
  %1267 = vmatmul.mubr.bf16.gmra.mrb[0].mxu0 %v784
  %v1268 = vpop.f32.mrb[0].mxu0
  %v1269 = vadd.f32 %v1060, %v1268
  %v1270 = vpop.f32.mrb[0].mxu0
  %v1271 = vadd.f32 %v1062, %v1270
  %v1272 = vpop.f32.mrb[0].mxu0
  %v1273 = vadd.f32 %v1064, %v1272
  %v1274 = vpop.f32.mrb[0].mxu0
  %v1275 = vadd.f32 %v1066, %v1274
  %1276 = vmatprep.mubr.bf16.mxu0 %v1203
  %1277 = vmatmul.mubr.bf16.gmra.mrb[0].mxu0 %v786
  %v1278 = vpop.f32.mrb[0].mxu0
  %v1279 = vadd.f32 %v1070, %v1278
  %v1280 = vpop.f32.mrb[0].mxu0
  %v1281 = vadd.f32 %v1072, %v1280
  %v1282 = vpop.f32.mrb[0].mxu0
  %v1283 = vadd.f32 %v1074, %v1282
  %v1284 = vpop.f32.mrb[0].mxu0
  %v1285 = vadd.f32 %v1076, %v1284
  %1286 = vmatprep.mubr.bf16.mxu0 %v1206
  %1287 = vmatmul.mubr.bf16.gmra.mrb[0].mxu0 %v788
  %v1288 = vpop.f32.mrb[0].mxu0
  %v1289 = vadd.f32 %v1080, %v1288
  %v1290 = vpop.f32.mrb[0].mxu0
  %v1291 = vadd.f32 %v1082, %v1290
  %v1292 = vpop.f32.mrb[0].mxu0
  %v1293 = vadd.f32 %v1084, %v1292
  %v1294 = vpop.f32.mrb[0].mxu0
  %v1295 = vadd.f32 %v1086, %v1294
  %1296 = vdwg.mxu0
  %s1297 = scalar_lea.vmem %s3, 336
  %v1298 = vld [vmem:[%s1297] sm:$0xff]
  %v1299 = vld [vmem:[%s1297 + $0x8] sm:$0xff]
  %v1300 = vld [vmem:[%s1297 + $0x10] sm:$0xff]
  %v1301 = vld [vmem:[%s1297 + $0x18] sm:$0xff]
  %v1302 = vld [vmem:[%s1297 + $0x20] sm:$0xff]
  %v1303 = vld [vmem:[%s1297 + $0x28] sm:$0xff]
  %v1304 = vld [vmem:[%s1297 + $0x30] sm:$0xff]
  %v1305 = vld [vmem:[%s1297 + $0x38] sm:$0xff]
  %v1306 = vld [vmem:[%s1297 + $0x40] sm:$0xff]
  %v1307 = vld [vmem:[%s1297 + $0x48] sm:$0xff]
  %v1308 = vld [vmem:[%s1297 + $0x50] sm:$0xff]
  %v1309 = vld [vmem:[%s1297 + $0x58] sm:$0xff]
  %v1310 = vld [vmem:[%s1297 + $0x60] sm:$0xff]
  %v1311 = vld [vmem:[%s1297 + $0x68] sm:$0xff]
  %v1312 = vld [vmem:[%s1297 + $0x70] sm:$0xff]
  %v1313 = vld [vmem:[%s1297 + $0x78] sm:$0xff]
  %v1314 = vld [vmem:[%s1297 + $0x80] sm:$0xff]
  %v1315 = vld [vmem:[%s1297 + $0x88] sm:$0xff]
  %v1316 = vld [vmem:[%s1297 + $0x90] sm:$0xff]
  %v1317 = vld [vmem:[%s1297 + $0x98] sm:$0xff]
  %v1318 = vld [vmem:[%s1297 + $0xa0] sm:$0x11]
  %v1340 = vunpack.c.l.b16 %v1298
  %v1341 = vunpack.c.h.b16 %v1298
  %v1342 = vunpack.c.l.b16 %v1299
  %v1343 = vunpack.c.h.b16 %v1299
  %v1344 = vunpack.c.l.b16 %v1300
  %v1345 = vunpack.c.h.b16 %v1300
  %v1346 = vunpack.c.l.b16 %v1301
  %v1347 = vunpack.c.h.b16 %v1301
  %v1348 = vunpack.c.l.b16 %v1302
  %v1349 = vunpack.c.h.b16 %v1302
  %v1350 = vunpack.c.l.b16 %v1303
  %v1351 = vunpack.c.h.b16 %v1303
  %v1352 = vunpack.c.l.b16 %v1304
  %v1353 = vunpack.c.h.b16 %v1304
  %v1354 = vunpack.c.l.b16 %v1305
  %v1355 = vunpack.c.h.b16 %v1305
  %v1356 = vunpack.c.l.b16 %v1306
  %v1357 = vunpack.c.h.b16 %v1306
  %v1358 = vunpack.c.l.b16 %v1307
  %v1359 = vunpack.c.h.b16 %v1307
  %v1360 = vunpack.c.l.b16 %v1308
  %v1361 = vunpack.c.h.b16 %v1308
  %v1362 = vunpack.c.l.b16 %v1309
  %v1363 = vunpack.c.h.b16 %v1309
  %v1364 = vunpack.c.l.b16 %v1310
  %v1365 = vunpack.c.h.b16 %v1310
  %v1366 = vunpack.c.l.b16 %v1311
  %v1367 = vunpack.c.h.b16 %v1311
  %v1368 = vunpack.c.l.b16 %v1312
  %v1369 = vunpack.c.h.b16 %v1312
  %v1370 = vunpack.c.l.b16 %v1313
  %v1371 = vunpack.c.h.b16 %v1313
  %v1372 = vunpack.c.l.b16 %v1314
  %v1373 = vunpack.c.h.b16 %v1314
  %v1374 = vunpack.c.l.b16 %v1315
  %v1375 = vunpack.c.h.b16 %v1315
  %v1376 = vunpack.c.l.b16 %v1316
  %v1377 = vunpack.c.h.b16 %v1316
  %v1378 = vunpack.c.l.b16 %v1317
  %v1379 = vunpack.c.h.b16 %v1317
  %v1380 = vunpack.c.l.b16 %v1318
  %v1381 = vunpack.c.h.b16 %v1318
  %v1382 = vpack.c.b16 %v1342, %v1340
  %v1383 = vpack.c.b16 %v1343, %v1341
  %v1384 = vpack.c.b16 %v1346, %v1344
  %v1385 = vpack.c.b16 %v1347, %v1345
  %v1386 = vpack.c.b16 %v1350, %v1348
  %v1387 = vpack.c.b16 %v1351, %v1349
  %v1388 = vpack.c.b16 %v1354, %v1352
  %v1389 = vpack.c.b16 %v1355, %v1353
  %v1390 = vpack.c.b16 %v1358, %v1356
  %v1391 = vpack.c.b16 %v1359, %v1357
  %v1392 = vpack.c.b16 %v1362, %v1360
  %v1393 = vpack.c.b16 %v1363, %v1361
  %v1394 = vpack.c.b16 %v1366, %v1364
  %v1395 = vpack.c.b16 %v1367, %v1365
  %v1396 = vpack.c.b16 %v1370, %v1368
  %v1397 = vpack.c.b16 %v1371, %v1369
  %v1398 = vpack.c.b16 %v1374, %v1372
  %v1399 = vpack.c.b16 %v1375, %v1373
  %v1400 = vpack.c.b16 %v1378, %v1376
  %v1401 = vpack.c.b16 %v1379, %v1377
  %v1402 = vpack.c.b16 %v1380, %v1380
  %v1403 = vpack.c.b16 %v1381, %v1381
  %v1425 = vsel %vm982, %v791, 0
  %v1428 = vsel %vm998, %v1402, 0
  %v1431 = vsel %vm998, %v1403, 0
  %1433 = vmatprep.subr.bf16.mxu0 %v1383
  %1434 = vmatpush1.bf16.msra.mxu0 %v1382
  %1435 = vmatprep.subr.bf16.mxu0 %v1385
  %1436 = vmatpush1.bf16.msra.mxu0 %v1384
  %1437 = vmatprep.subr.bf16.mxu0 %v1387
  %1438 = vmatpush1.bf16.msra.mxu0 %v1386
  %1439 = vmatprep.subr.bf16.mxu0 %v1389
  %1440 = vmatpush1.bf16.msra.mxu0 %v1388
  %1441 = vmatprep.subr.bf16.mxu0 %v1391
  %1442 = vmatpush1.bf16.msra.mxu0 %v1390
  %1443 = vmatprep.subr.bf16.mxu0 %v1393
  %1444 = vmatpush1.bf16.msra.mxu0 %v1392
  %1445 = vmatprep.subr.bf16.mxu0 %v1395
  %1446 = vmatpush1.bf16.msra.mxu0 %v1394
  %1447 = vmatprep.subr.bf16.mxu0 %v1397
  %1448 = vmatpush1.bf16.msra.mxu0 %v1396
  %1449 = vmatprep.subr.bf16.mxu0 %v1399
  %1450 = vmatpush1.bf16.msra.mxu0 %v1398
  %1451 = vmatprep.subr.bf16.mxu0 %v1401
  %1452 = vmatpush1.bf16.msra.mxu0 %v1400
  %1453 = vmatprep.subr.bf16.mxu0 %v1431
  %1454 = vmatpush1.bf16.msra.mxu0 %v1428
  %1455 = vmatprep.subr.bf16.mxu0 0
  %1456 = vmatpush1.bf16.msra.mxu0 0
  %1457 = vmatprep.subr.bf16.mxu0 0
  %1458 = vmatpush1.bf16.msra.mxu0 0
  %1459 = vmatprep.subr.bf16.mxu0 0
  %1460 = vmatpush1.bf16.msra.mxu0 0
  %1461 = vmatprep.subr.bf16.mxu0 0
  %1462 = vmatpush1.bf16.msra.mxu0 0
  %1463 = vmatprep.subr.bf16.mxu0 0
  %1464 = vmatpush1.bf16.msra.mxu0 0
  %1465 = vmatprep.mubr.bf16.mxu0 %v1197
  %1466 = vmatmul.mubr.bf16.gmra.mrb[0].mxu0 %v782
  %v1467 = vpop.f32.mrb[0].mxu0
  %v1468 = vadd.f32 0.0, %v1467
  %v1469 = vpop.f32.mrb[0].mxu0
  %v1470 = vadd.f32 0.0, %v1469
  %v1471 = vpop.f32.mrb[0].mxu0
  %v1472 = vadd.f32 0.0, %v1471
  %v1473 = vpop.f32.mrb[0].mxu0
  %v1474 = vadd.f32 0.0, %v1473
  %1475 = vmatprep.mubr.bf16.mxu0 %v1200
  %1476 = vmatmul.mubr.bf16.gmra.mrb[0].mxu0 %v784
  %v1477 = vpop.f32.mrb[0].mxu0
  %v1478 = vadd.f32 0.0, %v1477
  %v1479 = vpop.f32.mrb[0].mxu0
  %v1480 = vadd.f32 0.0, %v1479
  %v1481 = vpop.f32.mrb[0].mxu0
  %v1482 = vadd.f32 0.0, %v1481
  %v1483 = vpop.f32.mrb[0].mxu0
  %v1484 = vadd.f32 0.0, %v1483
  %1485 = vmatprep.mubr.bf16.mxu0 %v1203
  %1486 = vmatmul.mubr.bf16.gmra.mrb[0].mxu0 %v786
  %v1487 = vpop.f32.mrb[0].mxu0
  %v1488 = vadd.f32 0.0, %v1487
  %v1489 = vpop.f32.mrb[0].mxu0
  %v1490 = vadd.f32 0.0, %v1489
  %v1491 = vpop.f32.mrb[0].mxu0
  %v1492 = vadd.f32 0.0, %v1491
  %v1493 = vpop.f32.mrb[0].mxu0
  %v1494 = vadd.f32 0.0, %v1493
  %1495 = vmatprep.mubr.bf16.mxu0 %v1206
  %1496 = vmatmul.mubr.bf16.gmra.mrb[0].mxu0 %v788
  %v1497 = vpop.f32.mrb[0].mxu0
  %v1498 = vadd.f32 0.0, %v1497
  %v1499 = vpop.f32.mrb[0].mxu0
  %v1500 = vadd.f32 0.0, %v1499
  %v1501 = vpop.f32.mrb[0].mxu0
  %v1502 = vadd.f32 0.0, %v1501
  %v1503 = vpop.f32.mrb[0].mxu0
  %v1504 = vadd.f32 0.0, %v1503
  %1505 = vmatprep.mubr.bf16.mxu0 %v1425
  %1506 = vmatmul.mubr.bf16.gmra.mrb[0].mxu0 %v790
  %v1507 = vpop.f32.mrb[0].mxu0
  %v1508 = vadd.f32 0.0, %v1507
  %v1509 = vpop.f32.mrb[0].mxu0
  %v1510 = vadd.f32 0.0, %v1509
  %v1511 = vpop.f32.mrb[0].mxu0
  %v1512 = vadd.f32 0.0, %v1511
  %v1513 = vpop.f32.mrb[0].mxu0
  %v1514 = vadd.f32 0.0, %v1513
  %1515 = vdwg.mxu0
  %v1516 = vadd.f32 %v1249, %v1468
  %v1517 = vadd.f32 %v1251, %v1470
  %v1518 = vadd.f32 %v1253, %v1472
  %v1519 = vadd.f32 %v1255, %v1474
  %v1520 = vadd.f32 %v1259, %v1478
  %v1521 = vadd.f32 %v1261, %v1480
  %v1522 = vadd.f32 %v1263, %v1482
  %v1523 = vadd.f32 %v1265, %v1484
  %v1524 = vadd.f32 %v1269, %v1488
  %v1525 = vadd.f32 %v1271, %v1490
  %v1526 = vadd.f32 %v1273, %v1492
  %v1527 = vadd.f32 %v1275, %v1494
  %v1528 = vadd.f32 %v1279, %v1498
  %v1529 = vadd.f32 %v1281, %v1500
  %v1530 = vadd.f32 %v1283, %v1502
  %v1531 = vadd.f32 %v1285, %v1504
  %v1532 = vadd.f32 %v1289, %v1508
  %v1533 = vadd.f32 %v1291, %v1510
  %v1534 = vadd.f32 %v1293, %v1512
  %v1535 = vadd.f32 %v1295, %v1514
  %s1536 = scalar_lea.vmem %s3, 504
  %v1537 = vld [vmem:[%s1536] sm:$0xff]
  %v1538 = vld [vmem:[%s1536 + $0x8] sm:$0xff]
  %v1539 = vld [vmem:[%s1536 + $0x10] sm:$0xff]
  %v1540 = vld [vmem:[%s1536 + $0x18] sm:$0xff]
  %v1541 = vld [vmem:[%s1536 + $0x20] sm:$0xff]
  %v1542 = vld [vmem:[%s1536 + $0x28] sm:$0xff]
  %v1543 = vld [vmem:[%s1536 + $0x30] sm:$0xff]
  %v1544 = vld [vmem:[%s1536 + $0x38] sm:$0xff]
  %v1545 = vld [vmem:[%s1536 + $0x40] sm:$0xff]
  %v1546 = vld [vmem:[%s1536 + $0x48] sm:$0xff]
  %v1547 = vld [vmem:[%s1536 + $0x50] sm:$0xff]
  %v1548 = vld [vmem:[%s1536 + $0x58] sm:$0xff]
  %v1549 = vld [vmem:[%s1536 + $0x60] sm:$0xff]
  %v1550 = vld [vmem:[%s1536 + $0x68] sm:$0xff]
  %v1551 = vld [vmem:[%s1536 + $0x70] sm:$0xff]
  %v1552 = vld [vmem:[%s1536 + $0x78] sm:$0xff]
  %v1553 = vld [vmem:[%s1536 + $0x80] sm:$0xff]
  %v1554 = vld [vmem:[%s1536 + $0x88] sm:$0xff]
  %v1555 = vld [vmem:[%s1536 + $0x90] sm:$0xff]
  %v1556 = vld [vmem:[%s1536 + $0x98] sm:$0xff]
  %v1557 = vld [vmem:[%s1536 + $0xa0] sm:$0x11]
  %v1560 = vrot.slane %v792, 4
  %v1561 = vsel %vm849, %v868, %v1560
  %v1562 = vrot.slane %v793, 4
  %v1563 = vsel %vm849, %v870, %v1562
  %v1586 = vunpack.c.l.b16 %v1537
  %v1587 = vunpack.c.h.b16 %v1537
  %v1588 = vunpack.c.l.b16 %v1538
  %v1589 = vunpack.c.h.b16 %v1538
  %v1590 = vunpack.c.l.b16 %v1539
  %v1591 = vunpack.c.h.b16 %v1539
  %v1592 = vunpack.c.l.b16 %v1540
  %v1593 = vunpack.c.h.b16 %v1540
  %v1594 = vunpack.c.l.b16 %v1541
  %v1595 = vunpack.c.h.b16 %v1541
  %v1596 = vunpack.c.l.b16 %v1542
  %v1597 = vunpack.c.h.b16 %v1542
  %v1598 = vunpack.c.l.b16 %v1543
  %v1599 = vunpack.c.h.b16 %v1543
  %v1600 = vunpack.c.l.b16 %v1544
  %v1601 = vunpack.c.h.b16 %v1544
  %v1602 = vunpack.c.l.b16 %v1545
  %v1603 = vunpack.c.h.b16 %v1545
  %v1604 = vunpack.c.l.b16 %v1546
  %v1605 = vunpack.c.h.b16 %v1546
  %v1606 = vunpack.c.l.b16 %v1547
  %v1607 = vunpack.c.h.b16 %v1547
  %v1608 = vunpack.c.l.b16 %v1548
  %v1609 = vunpack.c.h.b16 %v1548
  %v1610 = vunpack.c.l.b16 %v1549
  %v1611 = vunpack.c.h.b16 %v1549
  %v1612 = vunpack.c.l.b16 %v1550
  %v1613 = vunpack.c.h.b16 %v1550
  %v1614 = vunpack.c.l.b16 %v1551
  %v1615 = vunpack.c.h.b16 %v1551
  %v1616 = vunpack.c.l.b16 %v1552
  %v1617 = vunpack.c.h.b16 %v1552
  %v1618 = vunpack.c.l.b16 %v1553
  %v1619 = vunpack.c.h.b16 %v1553
  %v1620 = vunpack.c.l.b16 %v1554
  %v1621 = vunpack.c.h.b16 %v1554
  %v1622 = vunpack.c.l.b16 %v1555
  %v1623 = vunpack.c.h.b16 %v1555
  %v1624 = vunpack.c.l.b16 %v1556
  %v1625 = vunpack.c.h.b16 %v1556
  %v1626 = vunpack.c.l.b16 %v1557
  %v1627 = vunpack.c.h.b16 %v1557
  %v1628 = vpack.c.b16 %v1588, %v1586
  %v1629 = vpack.c.b16 %v1589, %v1587
  %v1630 = vpack.c.b16 %v1592, %v1590
  %v1631 = vpack.c.b16 %v1593, %v1591
  %v1632 = vpack.c.b16 %v1596, %v1594
  %v1633 = vpack.c.b16 %v1597, %v1595
  %v1634 = vpack.c.b16 %v1600, %v1598
  %v1635 = vpack.c.b16 %v1601, %v1599
  %v1636 = vpack.c.b16 %v1604, %v1602
  %v1637 = vpack.c.b16 %v1605, %v1603
  %v1638 = vpack.c.b16 %v1608, %v1606
  %v1639 = vpack.c.b16 %v1609, %v1607
  %v1640 = vpack.c.b16 %v1612, %v1610
  %v1641 = vpack.c.b16 %v1613, %v1611
  %v1642 = vpack.c.b16 %v1616, %v1614
  %v1643 = vpack.c.b16 %v1617, %v1615
  %v1644 = vpack.c.b16 %v1620, %v1618
  %v1645 = vpack.c.b16 %v1621, %v1619
  %v1646 = vpack.c.b16 %v1624, %v1622
  %v1647 = vpack.c.b16 %v1625, %v1623
  %v1648 = vpack.c.b16 %v1626, %v1626
  %v1649 = vpack.c.b16 %v1627, %v1627
  %v1671 = vsel %vm982, %v1563, 0
  %v1674 = vsel %vm998, %v1648, 0
  %v1677 = vsel %vm998, %v1649, 0
  %1679 = vmatprep.subr.bf16.mxu0 %v1629
  %1680 = vmatpush1.bf16.msra.mxu0 %v1628
  %1681 = vmatprep.subr.bf16.mxu0 %v1631
  %1682 = vmatpush1.bf16.msra.mxu0 %v1630
  %1683 = vmatprep.subr.bf16.mxu0 %v1633
  %1684 = vmatpush1.bf16.msra.mxu0 %v1632
  %1685 = vmatprep.subr.bf16.mxu0 %v1635
  %1686 = vmatpush1.bf16.msra.mxu0 %v1634
  %1687 = vmatprep.subr.bf16.mxu0 %v1637
  %1688 = vmatpush1.bf16.msra.mxu0 %v1636
  %1689 = vmatprep.subr.bf16.mxu0 %v1639
  %1690 = vmatpush1.bf16.msra.mxu0 %v1638
  %1691 = vmatprep.subr.bf16.mxu0 %v1641
  %1692 = vmatpush1.bf16.msra.mxu0 %v1640
  %1693 = vmatprep.subr.bf16.mxu0 %v1643
  %1694 = vmatpush1.bf16.msra.mxu0 %v1642
  %1695 = vmatprep.subr.bf16.mxu0 %v1645
  %1696 = vmatpush1.bf16.msra.mxu0 %v1644
  %1697 = vmatprep.subr.bf16.mxu0 %v1647
  %1698 = vmatpush1.bf16.msra.mxu0 %v1646
  %1699 = vmatprep.subr.bf16.mxu0 %v1677
  %1700 = vmatpush1.bf16.msra.mxu0 %v1674
  %1701 = vmatprep.subr.bf16.mxu0 0
  %1702 = vmatpush1.bf16.msra.mxu0 0
  %1703 = vmatprep.subr.bf16.mxu0 0
  %1704 = vmatpush1.bf16.msra.mxu0 0
  %1705 = vmatprep.subr.bf16.mxu0 0
  %1706 = vmatpush1.bf16.msra.mxu0 0
  %1707 = vmatprep.subr.bf16.mxu0 0
  %1708 = vmatpush1.bf16.msra.mxu0 0
  %1709 = vmatprep.subr.bf16.mxu0 0
  %1710 = vmatpush1.bf16.msra.mxu0 0
  %1711 = vmatprep.mubr.bf16.mxu0 %v987
  %1712 = vmatmul.mubr.bf16.gmra.mrb[0].mxu0 %v857
  %v1713 = vpop.f32.mrb[0].mxu0
  %v1714 = vadd.f32 0.0, %v1713
  %v1715 = vpop.f32.mrb[0].mxu0
  %v1716 = vadd.f32 0.0, %v1715
  %v1717 = vpop.f32.mrb[0].mxu0
  %v1718 = vadd.f32 0.0, %v1717
  %v1719 = vpop.f32.mrb[0].mxu0
  %v1720 = vadd.f32 0.0, %v1719
  %1721 = vmatprep.mubr.bf16.mxu0 %v990
  %1722 = vmatmul.mubr.bf16.gmra.mrb[0].mxu0 %v861
  %v1723 = vpop.f32.mrb[0].mxu0
  %v1724 = vadd.f32 0.0, %v1723
  %v1725 = vpop.f32.mrb[0].mxu0
  %v1726 = vadd.f32 0.0, %v1725
  %v1727 = vpop.f32.mrb[0].mxu0
  %v1728 = vadd.f32 0.0, %v1727
  %v1729 = vpop.f32.mrb[0].mxu0
  %v1730 = vadd.f32 0.0, %v1729
  %1731 = vmatprep.mubr.bf16.mxu0 %v993
  %1732 = vmatmul.mubr.bf16.gmra.mrb[0].mxu0 %v865
  %v1733 = vpop.f32.mrb[0].mxu0
  %v1734 = vadd.f32 0.0, %v1733
  %v1735 = vpop.f32.mrb[0].mxu0
  %v1736 = vadd.f32 0.0, %v1735
  %v1737 = vpop.f32.mrb[0].mxu0
  %v1738 = vadd.f32 0.0, %v1737
  %v1739 = vpop.f32.mrb[0].mxu0
  %v1740 = vadd.f32 0.0, %v1739
  %1741 = vmatprep.mubr.bf16.mxu0 %v996
  %1742 = vmatmul.mubr.bf16.gmra.mrb[0].mxu0 %v869
  %v1743 = vpop.f32.mrb[0].mxu0
  %v1744 = vadd.f32 0.0, %v1743
  %v1745 = vpop.f32.mrb[0].mxu0
  %v1746 = vadd.f32 0.0, %v1745
  %v1747 = vpop.f32.mrb[0].mxu0
  %v1748 = vadd.f32 0.0, %v1747
  %v1749 = vpop.f32.mrb[0].mxu0
  %v1750 = vadd.f32 0.0, %v1749
  %1751 = vmatprep.mubr.bf16.mxu0 %v1671
  %1752 = vmatmul.mubr.bf16.gmra.mrb[0].mxu0 %v1561
  %v1753 = vpop.f32.mrb[0].mxu0
  %v1754 = vadd.f32 0.0, %v1753
  %v1755 = vpop.f32.mrb[0].mxu0
  %v1756 = vadd.f32 0.0, %v1755
  %v1757 = vpop.f32.mrb[0].mxu0
  %v1758 = vadd.f32 0.0, %v1757
  %v1759 = vpop.f32.mrb[0].mxu0
  %v1760 = vadd.f32 0.0, %v1759
  %1761 = vdwg.mxu0
  %v1762 = vadd.f32 %v1516, %v1714
  %v1763 = vadd.f32 %v1517, %v1716
  %v1764 = vadd.f32 %v1518, %v1718
  %v1765 = vadd.f32 %v1519, %v1720
  %v1766 = vadd.f32 %v1520, %v1724
  %v1767 = vadd.f32 %v1521, %v1726
  %v1768 = vadd.f32 %v1522, %v1728
  %v1769 = vadd.f32 %v1523, %v1730
  %v1770 = vadd.f32 %v1524, %v1734
  %v1771 = vadd.f32 %v1525, %v1736
  %v1772 = vadd.f32 %v1526, %v1738
  %v1773 = vadd.f32 %v1527, %v1740
  %v1774 = vadd.f32 %v1528, %v1744
  %v1775 = vadd.f32 %v1529, %v1746
  %v1776 = vadd.f32 %v1530, %v1748
  %v1777 = vadd.f32 %v1531, %v1750
  %v1778 = vadd.f32 %v1532, %v1754
  %v1779 = vadd.f32 %v1533, %v1756
  %v1780 = vadd.f32 %v1534, %v1758
  %v1781 = vadd.f32 %v1535, %v1760
  %s1782 = scalar_lea.vmem %s3, 672
  %v1783 = vld [vmem:[%s1782] sm:$0xff]
  %v1784 = vld [vmem:[%s1782 + $0x8] sm:$0xff]
  %v1785 = vld [vmem:[%s1782 + $0x10] sm:$0xff]
  %v1786 = vld [vmem:[%s1782 + $0x18] sm:$0xff]
  %v1787 = vld [vmem:[%s1782 + $0x20] sm:$0xff]
  %v1788 = vld [vmem:[%s1782 + $0x28] sm:$0xff]
  %v1789 = vld [vmem:[%s1782 + $0x30] sm:$0xff]
  %v1790 = vld [vmem:[%s1782 + $0x38] sm:$0xff]
  %v1791 = vld [vmem:[%s1782 + $0x40] sm:$0xff]
  %v1792 = vld [vmem:[%s1782 + $0x48] sm:$0xff]
  %v1793 = vld [vmem:[%s1782 + $0x50] sm:$0xff]
  %v1794 = vld [vmem:[%s1782 + $0x58] sm:$0xff]
  %v1795 = vld [vmem:[%s1782 + $0x60] sm:$0xff]
  %v1796 = vld [vmem:[%s1782 + $0x68] sm:$0xff]
  %v1797 = vld [vmem:[%s1782 + $0x70] sm:$0xff]
  %v1798 = vld [vmem:[%s1782 + $0x78] sm:$0xff]
  %v1799 = vld [vmem:[%s1782 + $0x80] sm:$0xff]
  %v1800 = vld [vmem:[%s1782 + $0x88] sm:$0xff]
  %v1801 = vld [vmem:[%s1782 + $0x90] sm:$0xff]
  %v1802 = vld [vmem:[%s1782 + $0x98] sm:$0xff]
  %v1803 = vld [vmem:[%s1782 + $0xa0] sm:$0x11]
  %v1825 = vunpack.c.l.b16 %v1783
  %v1826 = vunpack.c.h.b16 %v1783
  %v1827 = vunpack.c.l.b16 %v1784
  %v1828 = vunpack.c.h.b16 %v1784
  %v1829 = vunpack.c.l.b16 %v1785
  %v1830 = vunpack.c.h.b16 %v1785
  %v1831 = vunpack.c.l.b16 %v1786
  %v1832 = vunpack.c.h.b16 %v1786
  %v1833 = vunpack.c.l.b16 %v1787
  %v1834 = vunpack.c.h.b16 %v1787
  %v1835 = vunpack.c.l.b16 %v1788
  %v1836 = vunpack.c.h.b16 %v1788
  %v1837 = vunpack.c.l.b16 %v1789
  %v1838 = vunpack.c.h.b16 %v1789
  %v1839 = vunpack.c.l.b16 %v1790
  %v1840 = vunpack.c.h.b16 %v1790
  %v1841 = vunpack.c.l.b16 %v1791
  %v1842 = vunpack.c.h.b16 %v1791
  %v1843 = vunpack.c.l.b16 %v1792
  %v1844 = vunpack.c.h.b16 %v1792
  %v1845 = vunpack.c.l.b16 %v1793
  %v1846 = vunpack.c.h.b16 %v1793
  %v1847 = vunpack.c.l.b16 %v1794
  %v1848 = vunpack.c.h.b16 %v1794
  %v1849 = vunpack.c.l.b16 %v1795
  %v1850 = vunpack.c.h.b16 %v1795
  %v1851 = vunpack.c.l.b16 %v1796
  %v1852 = vunpack.c.h.b16 %v1796
  %v1853 = vunpack.c.l.b16 %v1797
  %v1854 = vunpack.c.h.b16 %v1797
  %v1855 = vunpack.c.l.b16 %v1798
  %v1856 = vunpack.c.h.b16 %v1798
  %v1857 = vunpack.c.l.b16 %v1799
  %v1858 = vunpack.c.h.b16 %v1799
  %v1859 = vunpack.c.l.b16 %v1800
  %v1860 = vunpack.c.h.b16 %v1800
  %v1861 = vunpack.c.l.b16 %v1801
  %v1862 = vunpack.c.h.b16 %v1801
  %v1863 = vunpack.c.l.b16 %v1802
  %v1864 = vunpack.c.h.b16 %v1802
  %v1865 = vunpack.c.l.b16 %v1803
  %v1866 = vunpack.c.h.b16 %v1803
  %v1867 = vpack.c.b16 %v1827, %v1825
  %v1868 = vpack.c.b16 %v1828, %v1826
  %v1869 = vpack.c.b16 %v1831, %v1829
  %v1870 = vpack.c.b16 %v1832, %v1830
  %v1871 = vpack.c.b16 %v1835, %v1833
  %v1872 = vpack.c.b16 %v1836, %v1834
  %v1873 = vpack.c.b16 %v1839, %v1837
  %v1874 = vpack.c.b16 %v1840, %v1838
  %v1875 = vpack.c.b16 %v1843, %v1841
  %v1876 = vpack.c.b16 %v1844, %v1842
  %v1877 = vpack.c.b16 %v1847, %v1845
  %v1878 = vpack.c.b16 %v1848, %v1846
  %v1879 = vpack.c.b16 %v1851, %v1849
  %v1880 = vpack.c.b16 %v1852, %v1850
  %v1881 = vpack.c.b16 %v1855, %v1853
  %v1882 = vpack.c.b16 %v1856, %v1854
  %v1883 = vpack.c.b16 %v1859, %v1857
  %v1884 = vpack.c.b16 %v1860, %v1858
  %v1885 = vpack.c.b16 %v1863, %v1861
  %v1886 = vpack.c.b16 %v1864, %v1862
  %v1887 = vpack.c.b16 %v1865, %v1865
  %v1888 = vpack.c.b16 %v1866, %v1866
  %v1910 = vsel %vm982, %v793, 0
  %v1913 = vsel %vm998, %v1887, 0
  %v1916 = vsel %vm998, %v1888, 0
  %1918 = vmatprep.subr.bf16.mxu0 %v1868
  %1919 = vmatpush1.bf16.msra.mxu0 %v1867
  %1920 = vmatprep.subr.bf16.mxu0 %v1870
  %1921 = vmatpush1.bf16.msra.mxu0 %v1869
  %1922 = vmatprep.subr.bf16.mxu0 %v1872
  %1923 = vmatpush1.bf16.msra.mxu0 %v1871
  %1924 = vmatprep.subr.bf16.mxu0 %v1874
  %1925 = vmatpush1.bf16.msra.mxu0 %v1873
  %1926 = vmatprep.subr.bf16.mxu0 %v1876
  %1927 = vmatpush1.bf16.msra.mxu0 %v1875
  %1928 = vmatprep.subr.bf16.mxu0 %v1878
  %1929 = vmatpush1.bf16.msra.mxu0 %v1877
  %1930 = vmatprep.subr.bf16.mxu0 %v1880
  %1931 = vmatpush1.bf16.msra.mxu0 %v1879
  %1932 = vmatprep.subr.bf16.mxu0 %v1882
  %1933 = vmatpush1.bf16.msra.mxu0 %v1881
  %1934 = vmatprep.subr.bf16.mxu0 %v1884
  %1935 = vmatpush1.bf16.msra.mxu0 %v1883
  %1936 = vmatprep.subr.bf16.mxu0 %v1886
  %1937 = vmatpush1.bf16.msra.mxu0 %v1885
  %1938 = vmatprep.subr.bf16.mxu0 %v1916
  %1939 = vmatpush1.bf16.msra.mxu0 %v1913
  %1940 = vmatprep.subr.bf16.mxu0 0
  %1941 = vmatpush1.bf16.msra.mxu0 0
  %1942 = vmatprep.subr.bf16.mxu0 0
  %1943 = vmatpush1.bf16.msra.mxu0 0
  %1944 = vmatprep.subr.bf16.mxu0 0
  %1945 = vmatpush1.bf16.msra.mxu0 0
  %1946 = vmatprep.subr.bf16.mxu0 0
  %1947 = vmatpush1.bf16.msra.mxu0 0
  %1948 = vmatprep.subr.bf16.mxu0 0
  %1949 = vmatpush1.bf16.msra.mxu0 0
  %1950 = vmatprep.mubr.bf16.mxu0 %v1200
  %1951 = vmatmul.mubr.bf16.gmra.mrb[0].mxu0 %v784
  %v1952 = vpop.f32.mrb[0].mxu0
  %v1953 = vadd.f32 0.0, %v1952
  %v1954 = vpop.f32.mrb[0].mxu0
  %v1955 = vadd.f32 0.0, %v1954
  %v1956 = vpop.f32.mrb[0].mxu0
  %v1957 = vadd.f32 0.0, %v1956
  %v1958 = vpop.f32.mrb[0].mxu0
  %v1959 = vadd.f32 0.0, %v1958
  %1960 = vmatprep.mubr.bf16.mxu0 %v1203
  %1961 = vmatmul.mubr.bf16.gmra.mrb[0].mxu0 %v786
  %v1962 = vpop.f32.mrb[0].mxu0
  %v1963 = vadd.f32 0.0, %v1962
  %v1964 = vpop.f32.mrb[0].mxu0
  %v1965 = vadd.f32 0.0, %v1964
  %v1966 = vpop.f32.mrb[0].mxu0
  %v1967 = vadd.f32 0.0, %v1966
  %v1968 = vpop.f32.mrb[0].mxu0
  %v1969 = vadd.f32 0.0, %v1968
  %1970 = vmatprep.mubr.bf16.mxu0 %v1206
  %1971 = vmatmul.mubr.bf16.gmra.mrb[0].mxu0 %v788
  %v1972 = vpop.f32.mrb[0].mxu0
  %v1973 = vadd.f32 0.0, %v1972
  %v1974 = vpop.f32.mrb[0].mxu0
  %v1975 = vadd.f32 0.0, %v1974
  %v1976 = vpop.f32.mrb[0].mxu0
  %v1977 = vadd.f32 0.0, %v1976
  %v1978 = vpop.f32.mrb[0].mxu0
  %v1979 = vadd.f32 0.0, %v1978
  %1980 = vmatprep.mubr.bf16.mxu0 %v1425
  %1981 = vmatmul.mubr.bf16.gmra.mrb[0].mxu0 %v790
  %v1982 = vpop.f32.mrb[0].mxu0
  %v1983 = vadd.f32 0.0, %v1982
  %v1984 = vpop.f32.mrb[0].mxu0
  %v1985 = vadd.f32 0.0, %v1984
  %v1986 = vpop.f32.mrb[0].mxu0
  %v1987 = vadd.f32 0.0, %v1986
  %v1988 = vpop.f32.mrb[0].mxu0
  %v1989 = vadd.f32 0.0, %v1988
  %1990 = vmatprep.mubr.bf16.mxu0 %v1910
  %1991 = vmatmul.mubr.bf16.gmra.mrb[0].mxu0 %v792
  %v1992 = vpop.f32.mrb[0].mxu0
  %v1993 = vadd.f32 0.0, %v1992
  %v1994 = vpop.f32.mrb[0].mxu0
  %v1995 = vadd.f32 0.0, %v1994
  %v1996 = vpop.f32.mrb[0].mxu0
  %v1997 = vadd.f32 0.0, %v1996
  %v1998 = vpop.f32.mrb[0].mxu0
  %v1999 = vadd.f32 0.0, %v1998
  %2000 = vdwg.mxu0
  %v2001 = vadd.f32 %v1762, %v1953
  %v2002 = vadd.f32 %v1763, %v1955
  %v2003 = vadd.f32 %v1764, %v1957
  %v2004 = vadd.f32 %v1765, %v1959
  %v2005 = vadd.f32 %v1766, %v1963
  %v2006 = vadd.f32 %v1767, %v1965
  %v2007 = vadd.f32 %v1768, %v1967
  %v2008 = vadd.f32 %v1769, %v1969
  %v2009 = vadd.f32 %v1770, %v1973
  %v2010 = vadd.f32 %v1771, %v1975
  %v2011 = vadd.f32 %v1772, %v1977
  %v2012 = vadd.f32 %v1773, %v1979
  %v2013 = vadd.f32 %v1774, %v1983
  %v2014 = vadd.f32 %v1775, %v1985
  %v2015 = vadd.f32 %v1776, %v1987
  %v2016 = vadd.f32 %v1777, %v1989
  %v2017 = vadd.f32 %v1778, %v1993
  %v2018 = vadd.f32 %v1779, %v1995
  %v2019 = vadd.f32 %v1780, %v1997
  %v2020 = vadd.f32 %v1781, %v1999
  %v2021 = vld [vmem:[%s4] sm:$0x3]
  %v2023 = vlaneseq
  %v2024 = vshrl.u32 %v2023, 7
  %v2025 = vsub.s32 0, %v2024
  %v2026 = vrot.slane %v2021, %v2025
  %v2027 = vlaneseq
  %v2028 = vshrl.u32 %v2027, 7
  %v2029 = vsub.s32 1, %v2028
  %v2030 = vrot.slane %v2021, %v2029
  %v2033 = vadd.f32 %v2001, %v2026
  %v2034 = vadd.f32 %v2002, %v2030
  %v2035 = vadd.f32 %v2003, %v2026
  %v2036 = vadd.f32 %v2004, %v2030
  %v2037 = vadd.f32 %v2005, %v2026
  %v2038 = vadd.f32 %v2006, %v2030
  %v2039 = vadd.f32 %v2007, %v2026
  %v2040 = vadd.f32 %v2008, %v2030
  %v2041 = vadd.f32 %v2009, %v2026
  %v2042 = vadd.f32 %v2010, %v2030
  %v2043 = vadd.f32 %v2011, %v2026
  %v2044 = vadd.f32 %v2012, %v2030
  %v2045 = vadd.f32 %v2013, %v2026
  %v2046 = vadd.f32 %v2014, %v2030
  %v2047 = vadd.f32 %v2015, %v2026
  %v2048 = vadd.f32 %v2016, %v2030
  %v2049 = vadd.f32 %v2017, %v2026
  %v2050 = vadd.f32 %v2018, %v2030
  %v2051 = vadd.f32 %v2019, %v2026
  %v2052 = vadd.f32 %v2020, %v2030
  %v2053 = vmax.f32 %v2033, 0.0
  %v2054 = vmax.f32 %v2034, 0.0
  %v2055 = vmax.f32 %v2035, 0.0
  %v2056 = vmax.f32 %v2036, 0.0
  %v2057 = vmax.f32 %v2037, 0.0
  %v2058 = vmax.f32 %v2038, 0.0
  %v2059 = vmax.f32 %v2039, 0.0
  %v2060 = vmax.f32 %v2040, 0.0
  %v2061 = vmax.f32 %v2041, 0.0
  %v2062 = vmax.f32 %v2042, 0.0
  %v2063 = vmax.f32 %v2043, 0.0
  %v2064 = vmax.f32 %v2044, 0.0
  %v2065 = vmax.f32 %v2045, 0.0
  %v2066 = vmax.f32 %v2046, 0.0
  %v2067 = vmax.f32 %v2047, 0.0
  %v2068 = vmax.f32 %v2048, 0.0
  %v2069 = vmax.f32 %v2049, 0.0
  %v2070 = vmax.f32 %v2050, 0.0
  %v2071 = vmax.f32 %v2051, 0.0
  %v2072 = vmax.f32 %v2052, 0.0
  %v2073 = vmax.f32 %v2053, %v2055
  %v2074 = vmax.f32 %v2054, %v2056
  %v2075 = vmax.f32 %v2057, %v2059
  %v2076 = vmax.f32 %v2058, %v2060
  %v2077 = vmax.f32 %v2061, %v2063
  %v2078 = vmax.f32 %v2062, %v2064
  %v2079 = vmax.f32 %v2065, %v2067
  %v2080 = vmax.f32 %v2066, %v2068
  %v2081 = vmax.f32 %v2069, %v2071
  %v2082 = vmax.f32 %v2070, %v2072
  %2093 = vrot.lane.b32.xlu0 %v2073, 112
  %v2094 = vpop.permute.xlu0 %2093
  %2095 = vrot.lane.b32.xlu0 %v2074, 112
  %v2096 = vpop.permute.xlu0 %2095
  %2097 = vrot.lane.b32.xlu0 %v2075, 112
  %v2098 = vpop.permute.xlu0 %2097
  %2099 = vrot.lane.b32.xlu0 %v2076, 112
  %v2100 = vpop.permute.xlu0 %2099
  %2101 = vrot.lane.b32.xlu0 %v2077, 112
  %v2102 = vpop.permute.xlu0 %2101
  %2103 = vrot.lane.b32.xlu0 %v2078, 112
  %v2104 = vpop.permute.xlu0 %2103
  %2105 = vrot.lane.b32.xlu0 %v2079, 112
  %v2106 = vpop.permute.xlu0 %2105
  %2107 = vrot.lane.b32.xlu0 %v2080, 112
  %v2108 = vpop.permute.xlu0 %2107
  %2109 = vrot.lane.b32.xlu0 %v2081, 112
  %v2110 = vpop.permute.xlu0 %2109
  %2111 = vrot.lane.b32.xlu0 %v2082, 112
  %v2112 = vpop.permute.xlu0 %2111
  %vm2113 = vcmask 916480
  %v2114 = vsel %vm2113, %v2094, %v2096
  %v2115 = vsel %vm2113, %v2098, %v2100
  %v2116 = vsel %vm2113, %v2102, %v2104
  %v2117 = vsel %vm2113, %v2106, %v2108
  %v2118 = vsel %vm2113, %v2110, %v2112
  %v2129 = vmax.f32 %v2073, %v2114
  %v2130 = vmax.f32 %v2074, %v2096
  %v2131 = vmax.f32 %v2075, %v2115
  %v2132 = vmax.f32 %v2076, %v2100
  %v2133 = vmax.f32 %v2077, %v2116
  %v2134 = vmax.f32 %v2078, %v2104
  %v2135 = vmax.f32 %v2079, %v2117
  %v2136 = vmax.f32 %v2080, %v2108
  %v2137 = vmax.f32 %v2081, %v2118
  %v2138 = vmax.f32 %v2082, %v2112
  %v2139 = vpack.c.bf16 %v2131, %v2129
  %v2140 = vpack.c.bf16 %v2132, %v2130
  %v2141 = vpack.c.bf16 %v2135, %v2133
  %v2142 = vpack.c.bf16 %v2136, %v2134
  %v2143 = vpack.c.bf16 %v2137, %v2137
  %v2144 = vpack.c.bf16 %v2138, %v2138
  %v2145 = vld [vmem:[%s5] sm:$0xf]
  %v2146 = vld [vmem:[%s5 + $0x4] sm:$0xf]
  %v2147 = vld [vmem:[%s5 + $0x8] sm:$0xf]
  %v2148 = vld [vmem:[%s5 + $0xc] sm:$0xf]
  %v2149 = vld [vmem:[%s5 + $0x10] sm:$0xf]
  %v2150 = vld [vmem:[%s5 + $0x14] sm:$0xf]
  %v2151 = vld [vmem:[%s5 + $0x18] sm:$0xf]
  %v2152 = vld [vmem:[%s5 + $0x1c] sm:$0xf]
  %v2153 = vld [vmem:[%s5 + $0x20] sm:$0xf]
  %v2154 = vld [vmem:[%s5 + $0x24] sm:$0xf]
  %v2155 = vld [vmem:[%s5 + $0x28] sm:$0xf]
  %v2156 = vld [vmem:[%s5 + $0x2c] sm:$0xf]
  %v2157 = vld [vmem:[%s5 + $0x30] sm:$0xf]
  %v2158 = vld [vmem:[%s5 + $0x34] sm:$0xf]
  %v2159 = vld [vmem:[%s5 + $0x38] sm:$0xf]
  %v2160 = vld [vmem:[%s5 + $0x3c] sm:$0xf]
  %v2161 = vld [vmem:[%s5 + $0x40] sm:$0xf]
  %v2162 = vld [vmem:[%s5 + $0x44] sm:$0xf]
  %s2163 = scalar_lea.vmem %s5, 72
  %v2164 = vld [vmem:[%s2163] sm:$0xf]
  %v2165 = vld [vmem:[%s2163 + $0x4] sm:$0xf]
  %v2166 = vld [vmem:[%s2163 + $0x8] sm:$0xf]
  %v2167 = vld [vmem:[%s2163 + $0xc] sm:$0xf]
  %v2168 = vld [vmem:[%s2163 + $0x10] sm:$0xf]
  %v2169 = vld [vmem:[%s2163 + $0x14] sm:$0xf]
  %v2170 = vld [vmem:[%s2163 + $0x18] sm:$0xf]
  %v2171 = vld [vmem:[%s2163 + $0x1c] sm:$0xf]
  %v2172 = vld [vmem:[%s2163 + $0x20] sm:$0xf]
  %v2173 = vld [vmem:[%s2163 + $0x24] sm:$0xf]
  %v2174 = vld [vmem:[%s2163 + $0x28] sm:$0xf]
  %v2175 = vld [vmem:[%s2163 + $0x2c] sm:$0xf]
  %v2176 = vld [vmem:[%s2163 + $0x30] sm:$0xf]
  %v2177 = vld [vmem:[%s2163 + $0x34] sm:$0xf]
  %v2178 = vld [vmem:[%s2163 + $0x38] sm:$0xf]
  %v2179 = vld [vmem:[%s2163 + $0x3c] sm:$0xf]
  %v2180 = vld [vmem:[%s2163 + $0x40] sm:$0xf]
  %v2181 = vld [vmem:[%s2163 + $0x44] sm:$0xf]
  %v2184 = vrot.slane %v2139, 4
  %v2185 = vrot.slane %v2140, 4
  %v2205 = vunpack.c.l.b16 %v2164
  %v2206 = vunpack.c.l.b16 %v2165
  %v2207 = vunpack.c.l.b16 %v2166
  %v2208 = vunpack.c.l.b16 %v2167
  %v2209 = vunpack.c.l.b16 %v2168
  %v2210 = vunpack.c.l.b16 %v2169
  %v2211 = vunpack.c.l.b16 %v2170
  %v2212 = vunpack.c.l.b16 %v2171
  %v2213 = vunpack.c.l.b16 %v2172
  %v2214 = vunpack.c.l.b16 %v2173
  %v2215 = vunpack.c.l.b16 %v2174
  %v2216 = vunpack.c.l.b16 %v2175
  %v2217 = vunpack.c.l.b16 %v2176
  %v2218 = vunpack.c.l.b16 %v2177
  %v2219 = vunpack.c.l.b16 %v2178
  %v2220 = vunpack.c.l.b16 %v2179
  %v2221 = vunpack.c.l.b16 %v2180
  %v2222 = vunpack.c.l.b16 %v2181
  %v2223 = vpack.c.b16 %v2206, %v2205
  %v2224 = vpack.c.b16 %v2208, %v2207
  %v2225 = vpack.c.b16 %v2210, %v2209
  %v2226 = vpack.c.b16 %v2212, %v2211
  %v2227 = vpack.c.b16 %v2214, %v2213
  %v2228 = vpack.c.b16 %v2216, %v2215
  %v2229 = vpack.c.b16 %v2218, %v2217
  %v2230 = vpack.c.b16 %v2220, %v2219
  %v2231 = vpack.c.b16 %v2222, %v2221
  %vm2241 = vcmask 130048
  %v2243 = vsel %vm2241, %v2185, 0
  %2245 = vmatprep.subr.bf16.mxu0 0
  %2246 = vmatpush1.bf16.msra.mxu0 %v2223
  %2247 = vmatprep.subr.bf16.mxu0 0
  %2248 = vmatpush1.bf16.msra.mxu0 %v2224
  %2249 = vmatprep.subr.bf16.mxu0 0
  %2250 = vmatpush1.bf16.msra.mxu0 %v2225
  %2251 = vmatprep.subr.bf16.mxu0 0
  %2252 = vmatpush1.bf16.msra.mxu0 %v2226
  %2253 = vmatprep.subr.bf16.mxu0 0
  %2254 = vmatpush1.bf16.msra.mxu0 %v2227
  %2255 = vmatprep.subr.bf16.mxu0 0
  %2256 = vmatpush1.bf16.msra.mxu0 %v2228
  %2257 = vmatprep.subr.bf16.mxu0 0
  %2258 = vmatpush1.bf16.msra.mxu0 %v2229
  %2259 = vmatprep.subr.bf16.mxu0 0
  %2260 = vmatpush1.bf16.msra.mxu0 %v2230
  %2261 = vmatprep.subr.bf16.mxu0 0
  %2262 = vmatpush1.bf16.msra.mxu0 %v2231
  %2263 = vmatprep.subr.bf16.mxu0 0
  %2264 = vmatpush1.bf16.msra.mxu0 0
  %2265 = vmatprep.subr.bf16.mxu0 0
  %2266 = vmatpush1.bf16.msra.mxu0 0
  %2267 = vmatprep.subr.bf16.mxu0 0
  %2268 = vmatpush1.bf16.msra.mxu0 0
  %2269 = vmatprep.subr.bf16.mxu0 0
  %2270 = vmatpush1.bf16.msra.mxu0 0
  %2271 = vmatprep.subr.bf16.mxu0 0
  %2272 = vmatpush1.bf16.msra.mxu0 0
  %2273 = vmatprep.subr.bf16.mxu0 0
  %2274 = vmatpush1.bf16.msra.mxu0 0
  %2275 = vmatprep.subr.bf16.mxu0 0
  %2276 = vmatpush1.bf16.msra.mxu0 0
  %2277 = vmatprep.mubr.bf16.mxu0 %v2243
  %2278 = vmatmul.mubr.bf16.gmra.mrb[0].mxu0 %v2184
  %v2279 = vpop.f32.mrb[0].mxu0
  %v2280 = vadd.f32 0.0, %v2279
  %v2281 = vpop.f32.mrb[0].mxu0
  %v2282 = vpop.f32.mrb[0].mxu0
  %v2283 = vpop.f32.mrb[0].mxu0
  %2284 = vdwg.mxu0
  %v2303 = vunpack.c.l.b16 %v2145
  %v2304 = vunpack.c.l.b16 %v2146
  %v2305 = vunpack.c.l.b16 %v2147
  %v2306 = vunpack.c.l.b16 %v2148
  %v2307 = vunpack.c.l.b16 %v2149
  %v2308 = vunpack.c.l.b16 %v2150
  %v2309 = vunpack.c.l.b16 %v2151
  %v2310 = vunpack.c.l.b16 %v2152
  %v2311 = vunpack.c.l.b16 %v2153
  %v2312 = vunpack.c.l.b16 %v2154
  %v2313 = vunpack.c.l.b16 %v2155
  %v2314 = vunpack.c.l.b16 %v2156
  %v2315 = vunpack.c.l.b16 %v2157
  %v2316 = vunpack.c.l.b16 %v2158
  %v2317 = vunpack.c.l.b16 %v2159
  %v2318 = vunpack.c.l.b16 %v2160
  %v2319 = vunpack.c.l.b16 %v2161
  %v2320 = vunpack.c.l.b16 %v2162
  %v2321 = vpack.c.b16 %v2304, %v2303
  %v2322 = vpack.c.b16 %v2306, %v2305
  %v2323 = vpack.c.b16 %v2308, %v2307
  %v2324 = vpack.c.b16 %v2310, %v2309
  %v2325 = vpack.c.b16 %v2312, %v2311
  %v2326 = vpack.c.b16 %v2314, %v2313
  %v2327 = vpack.c.b16 %v2316, %v2315
  %v2328 = vpack.c.b16 %v2318, %v2317
  %v2329 = vpack.c.b16 %v2320, %v2319
  %v2340 = vsel %vm2241, %v2140, 0
  %2342 = vmatprep.subr.bf16.mxu0 0
  %2343 = vmatpush1.bf16.msra.mxu0 %v2321
  %2344 = vmatprep.subr.bf16.mxu0 0
  %2345 = vmatpush1.bf16.msra.mxu0 %v2322
  %2346 = vmatprep.subr.bf16.mxu0 0
  %2347 = vmatpush1.bf16.msra.mxu0 %v2323
  %2348 = vmatprep.subr.bf16.mxu0 0
  %2349 = vmatpush1.bf16.msra.mxu0 %v2324
  %2350 = vmatprep.subr.bf16.mxu0 0
  %2351 = vmatpush1.bf16.msra.mxu0 %v2325
  %2352 = vmatprep.subr.bf16.mxu0 0
  %2353 = vmatpush1.bf16.msra.mxu0 %v2326
  %2354 = vmatprep.subr.bf16.mxu0 0
  %2355 = vmatpush1.bf16.msra.mxu0 %v2327
  %2356 = vmatprep.subr.bf16.mxu0 0
  %2357 = vmatpush1.bf16.msra.mxu0 %v2328
  %2358 = vmatprep.subr.bf16.mxu0 0
  %2359 = vmatpush1.bf16.msra.mxu0 %v2329
  %2360 = vmatprep.subr.bf16.mxu0 0
  %2361 = vmatpush1.bf16.msra.mxu0 0
  %2362 = vmatprep.subr.bf16.mxu0 0
  %2363 = vmatpush1.bf16.msra.mxu0 0
  %2364 = vmatprep.subr.bf16.mxu0 0
  %2365 = vmatpush1.bf16.msra.mxu0 0
  %2366 = vmatprep.subr.bf16.mxu0 0
  %2367 = vmatpush1.bf16.msra.mxu0 0
  %2368 = vmatprep.subr.bf16.mxu0 0
  %2369 = vmatpush1.bf16.msra.mxu0 0
  %2370 = vmatprep.subr.bf16.mxu0 0
  %2371 = vmatpush1.bf16.msra.mxu0 0
  %2372 = vmatprep.subr.bf16.mxu0 0
  %2373 = vmatpush1.bf16.msra.mxu0 0
  %2374 = vmatprep.mubr.bf16.mxu0 %v2340
  %2375 = vmatmul.mubr.bf16.gmra.mrb[0].mxu0 %v2139
  %v2376 = vpop.f32.mrb[0].mxu0
  %v2377 = vadd.f32 %v2280, %v2376
  %v2378 = vpop.f32.mrb[0].mxu0
  %v2379 = vpop.f32.mrb[0].mxu0
  %v2380 = vpop.f32.mrb[0].mxu0
  %2381 = vdwg.mxu0
  %s2382 = scalar_lea.vmem %s5, 144
  %v2383 = vld [vmem:[%s2382] sm:$0xf]
  %v2384 = vld [vmem:[%s2382 + $0x4] sm:$0xf]
  %v2385 = vld [vmem:[%s2382 + $0x8] sm:$0xf]
  %v2386 = vld [vmem:[%s2382 + $0xc] sm:$0xf]
  %v2387 = vld [vmem:[%s2382 + $0x10] sm:$0xf]
  %v2388 = vld [vmem:[%s2382 + $0x14] sm:$0xf]
  %v2389 = vld [vmem:[%s2382 + $0x18] sm:$0xf]
  %v2390 = vld [vmem:[%s2382 + $0x1c] sm:$0xf]
  %v2391 = vld [vmem:[%s2382 + $0x20] sm:$0xf]
  %v2392 = vld [vmem:[%s2382 + $0x24] sm:$0xf]
  %v2393 = vld [vmem:[%s2382 + $0x28] sm:$0xf]
  %v2394 = vld [vmem:[%s2382 + $0x2c] sm:$0xf]
  %v2395 = vld [vmem:[%s2382 + $0x30] sm:$0xf]
  %v2396 = vld [vmem:[%s2382 + $0x34] sm:$0xf]
  %v2397 = vld [vmem:[%s2382 + $0x38] sm:$0xf]
  %v2398 = vld [vmem:[%s2382 + $0x3c] sm:$0xf]
  %v2399 = vld [vmem:[%s2382 + $0x40] sm:$0xf]
  %v2400 = vld [vmem:[%s2382 + $0x44] sm:$0xf]
  %v2419 = vunpack.c.l.b16 %v2383
  %v2420 = vunpack.c.l.b16 %v2384
  %v2421 = vunpack.c.l.b16 %v2385
  %v2422 = vunpack.c.l.b16 %v2386
  %v2423 = vunpack.c.l.b16 %v2387
  %v2424 = vunpack.c.l.b16 %v2388
  %v2425 = vunpack.c.l.b16 %v2389
  %v2426 = vunpack.c.l.b16 %v2390
  %v2427 = vunpack.c.l.b16 %v2391
  %v2428 = vunpack.c.l.b16 %v2392
  %v2429 = vunpack.c.l.b16 %v2393
  %v2430 = vunpack.c.l.b16 %v2394
  %v2431 = vunpack.c.l.b16 %v2395
  %v2432 = vunpack.c.l.b16 %v2396
  %v2433 = vunpack.c.l.b16 %v2397
  %v2434 = vunpack.c.l.b16 %v2398
  %v2435 = vunpack.c.l.b16 %v2399
  %v2436 = vunpack.c.l.b16 %v2400
  %v2437 = vpack.c.b16 %v2420, %v2419
  %v2438 = vpack.c.b16 %v2422, %v2421
  %v2439 = vpack.c.b16 %v2424, %v2423
  %v2440 = vpack.c.b16 %v2426, %v2425
  %v2441 = vpack.c.b16 %v2428, %v2427
  %v2442 = vpack.c.b16 %v2430, %v2429
  %v2443 = vpack.c.b16 %v2432, %v2431
  %v2444 = vpack.c.b16 %v2434, %v2433
  %v2445 = vpack.c.b16 %v2436, %v2435
  %v2456 = vsel %vm2241, %v2142, 0
  %2458 = vmatprep.subr.bf16.mxu0 0
  %2459 = vmatpush1.bf16.msra.mxu0 %v2437
  %2460 = vmatprep.subr.bf16.mxu0 0
  %2461 = vmatpush1.bf16.msra.mxu0 %v2438
  %2462 = vmatprep.subr.bf16.mxu0 0
  %2463 = vmatpush1.bf16.msra.mxu0 %v2439
  %2464 = vmatprep.subr.bf16.mxu0 0
  %2465 = vmatpush1.bf16.msra.mxu0 %v2440
  %2466 = vmatprep.subr.bf16.mxu0 0
  %2467 = vmatpush1.bf16.msra.mxu0 %v2441
  %2468 = vmatprep.subr.bf16.mxu0 0
  %2469 = vmatpush1.bf16.msra.mxu0 %v2442
  %2470 = vmatprep.subr.bf16.mxu0 0
  %2471 = vmatpush1.bf16.msra.mxu0 %v2443
  %2472 = vmatprep.subr.bf16.mxu0 0
  %2473 = vmatpush1.bf16.msra.mxu0 %v2444
  %2474 = vmatprep.subr.bf16.mxu0 0
  %2475 = vmatpush1.bf16.msra.mxu0 %v2445
  %2476 = vmatprep.subr.bf16.mxu0 0
  %2477 = vmatpush1.bf16.msra.mxu0 0
  %2478 = vmatprep.subr.bf16.mxu0 0
  %2479 = vmatpush1.bf16.msra.mxu0 0
  %2480 = vmatprep.subr.bf16.mxu0 0
  %2481 = vmatpush1.bf16.msra.mxu0 0
  %2482 = vmatprep.subr.bf16.mxu0 0
  %2483 = vmatpush1.bf16.msra.mxu0 0
  %2484 = vmatprep.subr.bf16.mxu0 0
  %2485 = vmatpush1.bf16.msra.mxu0 0
  %2486 = vmatprep.subr.bf16.mxu0 0
  %2487 = vmatpush1.bf16.msra.mxu0 0
  %2488 = vmatprep.subr.bf16.mxu0 0
  %2489 = vmatpush1.bf16.msra.mxu0 0
  %2490 = vmatprep.mubr.bf16.mxu0 %v2456
  %2491 = vmatmul.mubr.bf16.gmra.mrb[0].mxu0 %v2141
  %v2492 = vpop.f32.mrb[0].mxu0
  %v2493 = vadd.f32 0.0, %v2492
  %v2494 = vpop.f32.mrb[0].mxu0
  %v2495 = vpop.f32.mrb[0].mxu0
  %v2496 = vpop.f32.mrb[0].mxu0
  %2497 = vdwg.mxu0
  %v2498 = vadd.f32 %v2377, %v2493
  %s2499 = scalar_lea.vmem %s5, 216
  %v2500 = vld [vmem:[%s2499] sm:$0xf]
  %v2501 = vld [vmem:[%s2499 + $0x4] sm:$0xf]
  %v2502 = vld [vmem:[%s2499 + $0x8] sm:$0xf]
  %v2503 = vld [vmem:[%s2499 + $0xc] sm:$0xf]
  %v2504 = vld [vmem:[%s2499 + $0x10] sm:$0xf]
  %v2505 = vld [vmem:[%s2499 + $0x14] sm:$0xf]
  %v2506 = vld [vmem:[%s2499 + $0x18] sm:$0xf]
  %v2507 = vld [vmem:[%s2499 + $0x1c] sm:$0xf]
  %v2508 = vld [vmem:[%s2499 + $0x20] sm:$0xf]
  %v2509 = vld [vmem:[%s2499 + $0x24] sm:$0xf]
  %v2510 = vld [vmem:[%s2499 + $0x28] sm:$0xf]
  %v2511 = vld [vmem:[%s2499 + $0x2c] sm:$0xf]
  %v2512 = vld [vmem:[%s2499 + $0x30] sm:$0xf]
  %v2513 = vld [vmem:[%s2499 + $0x34] sm:$0xf]
  %v2514 = vld [vmem:[%s2499 + $0x38] sm:$0xf]
  %v2515 = vld [vmem:[%s2499 + $0x3c] sm:$0xf]
  %v2516 = vld [vmem:[%s2499 + $0x40] sm:$0xf]
  %v2517 = vld [vmem:[%s2499 + $0x44] sm:$0xf]
  %v2520 = vrot.slane %v2141, 4
  %v2521 = vrot.slane %v2142, 4
  %v2541 = vunpack.c.l.b16 %v2500
  %v2542 = vunpack.c.l.b16 %v2501
  %v2543 = vunpack.c.l.b16 %v2502
  %v2544 = vunpack.c.l.b16 %v2503
  %v2545 = vunpack.c.l.b16 %v2504
  %v2546 = vunpack.c.l.b16 %v2505
  %v2547 = vunpack.c.l.b16 %v2506
  %v2548 = vunpack.c.l.b16 %v2507
  %v2549 = vunpack.c.l.b16 %v2508
  %v2550 = vunpack.c.l.b16 %v2509
  %v2551 = vunpack.c.l.b16 %v2510
  %v2552 = vunpack.c.l.b16 %v2511
  %v2553 = vunpack.c.l.b16 %v2512
  %v2554 = vunpack.c.l.b16 %v2513
  %v2555 = vunpack.c.l.b16 %v2514
  %v2556 = vunpack.c.l.b16 %v2515
  %v2557 = vunpack.c.l.b16 %v2516
  %v2558 = vunpack.c.l.b16 %v2517
  %v2559 = vpack.c.b16 %v2542, %v2541
  %v2560 = vpack.c.b16 %v2544, %v2543
  %v2561 = vpack.c.b16 %v2546, %v2545
  %v2562 = vpack.c.b16 %v2548, %v2547
  %v2563 = vpack.c.b16 %v2550, %v2549
  %v2564 = vpack.c.b16 %v2552, %v2551
  %v2565 = vpack.c.b16 %v2554, %v2553
  %v2566 = vpack.c.b16 %v2556, %v2555
  %v2567 = vpack.c.b16 %v2558, %v2557
  %v2578 = vsel %vm2241, %v2521, 0
  %2580 = vmatprep.subr.bf16.mxu0 0
  %2581 = vmatpush1.bf16.msra.mxu0 %v2559
  %2582 = vmatprep.subr.bf16.mxu0 0
  %2583 = vmatpush1.bf16.msra.mxu0 %v2560
  %2584 = vmatprep.subr.bf16.mxu0 0
  %2585 = vmatpush1.bf16.msra.mxu0 %v2561
  %2586 = vmatprep.subr.bf16.mxu0 0
  %2587 = vmatpush1.bf16.msra.mxu0 %v2562
  %2588 = vmatprep.subr.bf16.mxu0 0
  %2589 = vmatpush1.bf16.msra.mxu0 %v2563
  %2590 = vmatprep.subr.bf16.mxu0 0
  %2591 = vmatpush1.bf16.msra.mxu0 %v2564
  %2592 = vmatprep.subr.bf16.mxu0 0
  %2593 = vmatpush1.bf16.msra.mxu0 %v2565
  %2594 = vmatprep.subr.bf16.mxu0 0
  %2595 = vmatpush1.bf16.msra.mxu0 %v2566
  %2596 = vmatprep.subr.bf16.mxu0 0
  %2597 = vmatpush1.bf16.msra.mxu0 %v2567
  %2598 = vmatprep.subr.bf16.mxu0 0
  %2599 = vmatpush1.bf16.msra.mxu0 0
  %2600 = vmatprep.subr.bf16.mxu0 0
  %2601 = vmatpush1.bf16.msra.mxu0 0
  %2602 = vmatprep.subr.bf16.mxu0 0
  %2603 = vmatpush1.bf16.msra.mxu0 0
  %2604 = vmatprep.subr.bf16.mxu0 0
  %2605 = vmatpush1.bf16.msra.mxu0 0
  %2606 = vmatprep.subr.bf16.mxu0 0
  %2607 = vmatpush1.bf16.msra.mxu0 0
  %2608 = vmatprep.subr.bf16.mxu0 0
  %2609 = vmatpush1.bf16.msra.mxu0 0
  %2610 = vmatprep.subr.bf16.mxu0 0
  %2611 = vmatpush1.bf16.msra.mxu0 0
  %2612 = vmatprep.mubr.bf16.mxu0 %v2578
  %2613 = vmatmul.mubr.bf16.gmra.mrb[0].mxu0 %v2520
  %v2614 = vpop.f32.mrb[0].mxu0
  %v2615 = vadd.f32 0.0, %v2614
  %v2616 = vpop.f32.mrb[0].mxu0
  %v2617 = vpop.f32.mrb[0].mxu0
  %v2618 = vpop.f32.mrb[0].mxu0
  %2619 = vdwg.mxu0
  %v2620 = vadd.f32 %v2498, %v2615
  %s2621 = scalar_lea.vmem %s5, 288
  %v2622 = vld [vmem:[%s2621] sm:$0xf]
  %v2623 = vld [vmem:[%s2621 + $0x4] sm:$0xf]
  %v2624 = vld [vmem:[%s2621 + $0x8] sm:$0xf]
  %v2625 = vld [vmem:[%s2621 + $0xc] sm:$0xf]
  %v2626 = vld [vmem:[%s2621 + $0x10] sm:$0xf]
  %v2627 = vld [vmem:[%s2621 + $0x14] sm:$0xf]
  %v2628 = vld [vmem:[%s2621 + $0x18] sm:$0xf]
  %v2629 = vld [vmem:[%s2621 + $0x1c] sm:$0xf]
  %v2630 = vld [vmem:[%s2621 + $0x20] sm:$0xf]
  %v2631 = vld [vmem:[%s2621 + $0x24] sm:$0xf]
  %v2632 = vld [vmem:[%s2621 + $0x28] sm:$0xf]
  %v2633 = vld [vmem:[%s2621 + $0x2c] sm:$0xf]
  %v2634 = vld [vmem:[%s2621 + $0x30] sm:$0xf]
  %v2635 = vld [vmem:[%s2621 + $0x34] sm:$0xf]
  %v2636 = vld [vmem:[%s2621 + $0x38] sm:$0xf]
  %v2637 = vld [vmem:[%s2621 + $0x3c] sm:$0xf]
  %v2638 = vld [vmem:[%s2621 + $0x40] sm:$0xf]
  %v2639 = vld [vmem:[%s2621 + $0x44] sm:$0xf]
  %v2658 = vunpack.c.l.b16 %v2622
  %v2659 = vunpack.c.l.b16 %v2623
  %v2660 = vunpack.c.l.b16 %v2624
  %v2661 = vunpack.c.l.b16 %v2625
  %v2662 = vunpack.c.l.b16 %v2626
  %v2663 = vunpack.c.l.b16 %v2627
  %v2664 = vunpack.c.l.b16 %v2628
  %v2665 = vunpack.c.l.b16 %v2629
  %v2666 = vunpack.c.l.b16 %v2630
  %v2667 = vunpack.c.l.b16 %v2631
  %v2668 = vunpack.c.l.b16 %v2632
  %v2669 = vunpack.c.l.b16 %v2633
  %v2670 = vunpack.c.l.b16 %v2634
  %v2671 = vunpack.c.l.b16 %v2635
  %v2672 = vunpack.c.l.b16 %v2636
  %v2673 = vunpack.c.l.b16 %v2637
  %v2674 = vunpack.c.l.b16 %v2638
  %v2675 = vunpack.c.l.b16 %v2639
  %v2676 = vpack.c.b16 %v2659, %v2658
  %v2677 = vpack.c.b16 %v2661, %v2660
  %v2678 = vpack.c.b16 %v2663, %v2662
  %v2679 = vpack.c.b16 %v2665, %v2664
  %v2680 = vpack.c.b16 %v2667, %v2666
  %v2681 = vpack.c.b16 %v2669, %v2668
  %v2682 = vpack.c.b16 %v2671, %v2670
  %v2683 = vpack.c.b16 %v2673, %v2672
  %v2684 = vpack.c.b16 %v2675, %v2674
  %v2695 = vsel %vm2241, %v2144, 0
  %2697 = vmatprep.subr.bf16.mxu0 0
  %2698 = vmatpush1.bf16.msra.mxu0 %v2676
  %2699 = vmatprep.subr.bf16.mxu0 0
  %2700 = vmatpush1.bf16.msra.mxu0 %v2677
  %2701 = vmatprep.subr.bf16.mxu0 0
  %2702 = vmatpush1.bf16.msra.mxu0 %v2678
  %2703 = vmatprep.subr.bf16.mxu0 0
  %2704 = vmatpush1.bf16.msra.mxu0 %v2679
  %2705 = vmatprep.subr.bf16.mxu0 0
  %2706 = vmatpush1.bf16.msra.mxu0 %v2680
  %2707 = vmatprep.subr.bf16.mxu0 0
  %2708 = vmatpush1.bf16.msra.mxu0 %v2681
  %2709 = vmatprep.subr.bf16.mxu0 0
  %2710 = vmatpush1.bf16.msra.mxu0 %v2682
  %2711 = vmatprep.subr.bf16.mxu0 0
  %2712 = vmatpush1.bf16.msra.mxu0 %v2683
  %2713 = vmatprep.subr.bf16.mxu0 0
  %2714 = vmatpush1.bf16.msra.mxu0 %v2684
  %2715 = vmatprep.subr.bf16.mxu0 0
  %2716 = vmatpush1.bf16.msra.mxu0 0
  %2717 = vmatprep.subr.bf16.mxu0 0
  %2718 = vmatpush1.bf16.msra.mxu0 0
  %2719 = vmatprep.subr.bf16.mxu0 0
  %2720 = vmatpush1.bf16.msra.mxu0 0
  %2721 = vmatprep.subr.bf16.mxu0 0
  %2722 = vmatpush1.bf16.msra.mxu0 0
  %2723 = vmatprep.subr.bf16.mxu0 0
  %2724 = vmatpush1.bf16.msra.mxu0 0
  %2725 = vmatprep.subr.bf16.mxu0 0
  %2726 = vmatpush1.bf16.msra.mxu0 0
  %2727 = vmatprep.subr.bf16.mxu0 0
  %2728 = vmatpush1.bf16.msra.mxu0 0
  %2729 = vmatprep.mubr.bf16.mxu0 %v2695
  %2730 = vmatmul.mubr.bf16.gmra.mrb[0].mxu0 %v2143
  %v2731 = vpop.f32.mrb[0].mxu0
  %v2732 = vadd.f32 0.0, %v2731
  %v2733 = vpop.f32.mrb[0].mxu0
  %v2734 = vpop.f32.mrb[0].mxu0
  %v2735 = vpop.f32.mrb[0].mxu0
  %2736 = vdwg.mxu0
  %v2737 = vadd.f32 %v2620, %v2732
  %v2738 = vld [vmem:[%s6] sm:$0x1]
  %v2740 = vlaneseq
  %v2741 = vshrl.u32 %v2740, 7
  %v2742 = vsub.s32 0, %v2741
  %v2743 = vrot.slane %v2738, %v2742
  %v2745 = vadd.f32 %v2737, %v2743
  %v2746 = vmax.f32 %v2745, 0.0
  %v2747 = vpack.c.bf16 %v2746, %v2746
  %v2748 = vld [vmem:[%s7] sm:$0xf]
  %v2749 = vld [vmem:[%s7 + $0x4] sm:$0xf]
  %v2750 = vld [vmem:[%s7 + $0x8] sm:$0xf]
  %v2751 = vld [vmem:[%s7 + $0xc] sm:$0xf]
  %v2752 = vld [vmem:[%s7 + $0x10] sm:$0xf]
  %v2753 = vld [vmem:[%s7 + $0x14] sm:$0xf]
  %v2754 = vld [vmem:[%s7 + $0x18] sm:$0xf]
  %v2755 = vld [vmem:[%s7 + $0x1c] sm:$0xf]
  %v2756 = vld [vmem:[%s7 + $0x20] sm:$0xf]
  %v2757 = vld [vmem:[%s7 + $0x24] sm:$0xf]
  %v2758 = vld [vmem:[%s7 + $0x28] sm:$0xf]
  %v2759 = vld [vmem:[%s7 + $0x2c] sm:$0xf]
  %v2760 = vld [vmem:[%s7 + $0x30] sm:$0xf]
  %v2761 = vld [vmem:[%s7 + $0x34] sm:$0xf]
  %v2762 = vld [vmem:[%s7 + $0x38] sm:$0xf]
  %v2763 = vld [vmem:[%s8] sm:$0x1]
  %v2765 = vlaneseq
  %v2766 = vshrl.u32 %v2765, 7
  %v2767 = vsub.s32 0, %v2766
  %v2768 = vrot.slane %v2763, %v2767
  %v2785 = vunpack.c.l.b16 %v2748
  %v2786 = vunpack.c.l.b16 %v2749
  %v2787 = vunpack.c.l.b16 %v2750
  %v2788 = vunpack.c.l.b16 %v2751
  %v2789 = vunpack.c.l.b16 %v2752
  %v2790 = vunpack.c.l.b16 %v2753
  %v2791 = vunpack.c.l.b16 %v2754
  %v2792 = vunpack.c.l.b16 %v2755
  %v2793 = vunpack.c.l.b16 %v2756
  %v2794 = vunpack.c.l.b16 %v2757
  %v2795 = vunpack.c.l.b16 %v2758
  %v2796 = vunpack.c.l.b16 %v2759
  %v2797 = vunpack.c.l.b16 %v2760
  %v2798 = vunpack.c.l.b16 %v2761
  %v2799 = vunpack.c.l.b16 %v2762
  %v2800 = vpack.c.b16 %v2786, %v2785
  %v2801 = vpack.c.b16 %v2788, %v2787
  %v2802 = vpack.c.b16 %v2790, %v2789
  %v2803 = vpack.c.b16 %v2792, %v2791
  %v2804 = vpack.c.b16 %v2794, %v2793
  %v2805 = vpack.c.b16 %v2796, %v2795
  %v2806 = vpack.c.b16 %v2798, %v2797
  %v2807 = vpack.c.b16 %v2799, %v2799
  %vm2815 = vcmask 982016
  %v2817 = vsel %vm2815, %v2747, 0
  %vm2819 = vcmask 1043456
  %v2821 = vsel %vm2819, %v2807, 0
  %2823 = vmatprep.subr.bf16.mxu0 0
  %2824 = vmatpush1.bf16.msra.mxu0 %v2800
  %2825 = vmatprep.subr.bf16.mxu0 0
  %2826 = vmatpush1.bf16.msra.mxu0 %v2801
  %2827 = vmatprep.subr.bf16.mxu0 0
  %2828 = vmatpush1.bf16.msra.mxu0 %v2802
  %2829 = vmatprep.subr.bf16.mxu0 0
  %2830 = vmatpush1.bf16.msra.mxu0 %v2803
  %2831 = vmatprep.subr.bf16.mxu0 0
  %2832 = vmatpush1.bf16.msra.mxu0 %v2804
  %2833 = vmatprep.subr.bf16.mxu0 0
  %2834 = vmatpush1.bf16.msra.mxu0 %v2805
  %2835 = vmatprep.subr.bf16.mxu0 0
  %2836 = vmatpush1.bf16.msra.mxu0 %v2806
  %2837 = vmatprep.subr.bf16.mxu0 0
  %2838 = vmatpush1.bf16.msra.mxu0 %v2821
  %2839 = vmatprep.subr.bf16.mxu0 0
  %2840 = vmatpush1.bf16.msra.mxu0 0
  %2841 = vmatprep.subr.bf16.mxu0 0
  %2842 = vmatpush1.bf16.msra.mxu0 0
  %2843 = vmatprep.subr.bf16.mxu0 0
  %2844 = vmatpush1.bf16.msra.mxu0 0
  %2845 = vmatprep.subr.bf16.mxu0 0
  %2846 = vmatpush1.bf16.msra.mxu0 0
  %2847 = vmatprep.subr.bf16.mxu0 0
  %2848 = vmatpush1.bf16.msra.mxu0 0
  %2849 = vmatprep.subr.bf16.mxu0 0
  %2850 = vmatpush1.bf16.msra.mxu0 0
  %2851 = vmatprep.subr.bf16.mxu0 0
  %2852 = vmatpush1.bf16.msra.mxu0 0
  %2853 = vmatprep.subr.bf16.mxu0 0
  %2854 = vmatpush1.bf16.msra.mxu0 0
  %2855 = vmatprep.mubr.bf16.mxu0 0
  %2856 = vmatmul.mubr.bf16.gmra.mrb[0].mxu0 %v2817
  %v2857 = vpop.f32.mrb[0].mxu0
  %v2858 = vadd.f32 %v2768, %v2857
  %v2859 = vpop.f32.mrb[0].mxu0
  %v2860 = vpop.f32.mrb[0].mxu0
  %v2861 = vpop.f32.mrb[0].mxu0
  %2862 = vdwg.mxu0
  %v2863 = vmax.f32 %v2858, 0.0
  %v2864 = vpack.c.bf16 %v2863, %v2863
  %v2865 = vld [vmem:[%s9] sm:$0xf]
  %v2866 = vld [vmem:[%s9 + $0x4] sm:$0xf]
  %v2867 = vld [vmem:[%s9 + $0x8] sm:$0xf]
  %v2868 = vld [vmem:[%s9 + $0xc] sm:$0xf]
  %v2869 = vld [vmem:[%s9 + $0x10] sm:$0xf]
  %v2870 = vld [vmem:[%s9 + $0x14] sm:$0xf]
  %v2871 = vld [vmem:[%s9 + $0x18] sm:$0xf]
  %v2872 = vld [vmem:[%s9 + $0x1c] sm:$0xf]
  %v2873 = vld [vmem:[%s9 + $0x20] sm:$0xf]
  %v2874 = vld [vmem:[%s9 + $0x24] sm:$0xf]
  %v2875 = vld [vmem:[%s9 + $0x28] sm:$0x3]
  %v2876 = vld [vmem:[%s10] sm:$0x1]
  %v2878 = vlaneseq
  %v2879 = vshrl.u32 %v2878, 7
  %v2880 = vsub.s32 0, %v2879
  %v2881 = vrot.slane %v2876, %v2880
  %v2894 = vunpack.c.l.b16 %v2865
  %v2895 = vunpack.c.l.b16 %v2866
  %v2896 = vunpack.c.l.b16 %v2867
  %v2897 = vunpack.c.l.b16 %v2868
  %v2898 = vunpack.c.l.b16 %v2869
  %v2899 = vunpack.c.l.b16 %v2870
  %v2900 = vunpack.c.l.b16 %v2871
  %v2901 = vunpack.c.l.b16 %v2872
  %v2902 = vunpack.c.l.b16 %v2873
  %v2903 = vunpack.c.l.b16 %v2874
  %v2904 = vunpack.c.l.b16 %v2875
  %v2905 = vpack.c.b16 %v2895, %v2894
  %v2906 = vpack.c.b16 %v2897, %v2896
  %v2907 = vpack.c.b16 %v2899, %v2898
  %v2908 = vpack.c.b16 %v2901, %v2900
  %v2909 = vpack.c.b16 %v2903, %v2902
  %v2910 = vpack.c.b16 %v2904, %v2904
  %vm2916 = vcmask 687104
  %v2918 = vsel %vm2916, %v2864, 0
  %vm2920 = vcmask 1041408
  %v2922 = vsel %vm2920, %v2910, 0
  %2924 = vmatprep.subr.bf16.mxu0 0
  %2925 = vmatpush1.bf16.msra.mxu0 %v2905
  %2926 = vmatprep.subr.bf16.mxu0 0
  %2927 = vmatpush1.bf16.msra.mxu0 %v2906
  %2928 = vmatprep.subr.bf16.mxu0 0
  %2929 = vmatpush1.bf16.msra.mxu0 %v2907
  %2930 = vmatprep.subr.bf16.mxu0 0
  %2931 = vmatpush1.bf16.msra.mxu0 %v2908
  %2932 = vmatprep.subr.bf16.mxu0 0
  %2933 = vmatpush1.bf16.msra.mxu0 %v2909
  %2934 = vmatprep.subr.bf16.mxu0 0
  %2935 = vmatpush1.bf16.msra.mxu0 %v2922
  %2936 = vmatprep.subr.bf16.mxu0 0
  %2937 = vmatpush1.bf16.msra.mxu0 0
  %2938 = vmatprep.subr.bf16.mxu0 0
  %2939 = vmatpush1.bf16.msra.mxu0 0
  %2940 = vmatprep.subr.bf16.mxu0 0
  %2941 = vmatpush1.bf16.msra.mxu0 0
  %2942 = vmatprep.subr.bf16.mxu0 0
  %2943 = vmatpush1.bf16.msra.mxu0 0
  %2944 = vmatprep.subr.bf16.mxu0 0
  %2945 = vmatpush1.bf16.msra.mxu0 0
  %2946 = vmatprep.subr.bf16.mxu0 0
  %2947 = vmatpush1.bf16.msra.mxu0 0
  %2948 = vmatprep.subr.bf16.mxu0 0
  %2949 = vmatpush1.bf16.msra.mxu0 0
  %2950 = vmatprep.subr.bf16.mxu0 0
  %2951 = vmatpush1.bf16.msra.mxu0 0
  %2952 = vmatprep.subr.bf16.mxu0 0
  %2953 = vmatpush1.bf16.msra.mxu0 0
  %2954 = vmatprep.subr.bf16.mxu0 0
  %2955 = vmatpush1.bf16.msra.mxu0 0
  %2956 = vmatprep.mubr.bf16.mxu0 0
  %2957 = vmatmul.mubr.bf16.gmra.mrb[0].mxu0 %v2918
  %v2958 = vpop.f32.mrb[0].mxu0
  %v2959 = vadd.f32 %v2881, %v2958
  %v2960 = vpop.f32.mrb[0].mxu0
  %v2961 = vpop.f32.mrb[0].mxu0
  %v2962 = vpop.f32.mrb[0].mxu0
  %2963 = vdwg.mxu0
  %vm2964 = vcmask 80896
  %2965 = vst.msk [vmem:[%s11] sm:$0xff] %vm2964, %v2959
  // Predicated region
  $region46: #{lenet_forward.1} parent=0 // pred_check
    _
  $region47: #{lenet_forward.1} parent=0 // pred_check_branch
    %2967 = sbr.rel (0) target = $region49
  $region48: #{lenet_forward.1} parent=0 // pred_region
    _
  $region49: #{lenet_forward.1} parent=0 // pred_fallthru
    _
  // Predicated region
  $region50: #{lenet_forward.1} parent=0 // pred_check
    _
  $region51: #{lenet_forward.1} parent=0 // pred_check_branch
    %2969 = sbr.rel (0) target = $region53
  $region52: #{lenet_forward.1} parent=0 // pred_region
    _
  $region53: #{lenet_forward.1} parent=0 // pred_fallthru
    _

</llo_original>
